<compile_context>
chip_gen: v6e
topology: v6e:2x2x1
jax: 0.10.0
libtpu: 0.0.40
codegen_flags: <defaults>
</compile_context>

<pallas_src>
import functools

import numpy as np
import jax
import jax.numpy as jnp
from jax import lax
from jax.experimental import pallas as pl
from jax.experimental.pallas import tpu as pltpu


def _shift_lanes(y, d):
    """shifted[:, i] = y[:, i + d]; positions outside [0, N) are zero."""
    C, N = y.shape
    if d == 0:
        return y
    z = jnp.zeros((C, abs(d)), y.dtype)
    if d > 0:
        return jnp.concatenate([y[:, d:], z], axis=1)
    return jnp.concatenate([z, y[:, :N + d]], axis=1)


def _attention_kernel(dim, num_heads, B, H, W,
                      x_ref, wqkv_ref, bqkv_ref, wdw_ref, bdw_ref,
                      wpo_ref, bpo_ref, temp_ref, hmask_ref,
                      hidx_ref, widx_ref, o_ref):
    del num_heads  # head structure is carried by hmask / temp tables
    C3 = 3 * dim
    HW = H * W
    N = B * HW

    x = x_ref[...].astype(jnp.float32)            # (dim, N)   channel-major
    wqkv = wqkv_ref[...]                          # (C3, dim)

    # ---- qkv 1x1 conv: VPU broadcast-MACs (no tiny-K MXU GEMM) ----
    y = wqkv[:, 0:1] * x[0:1, :]
    for ci in range(1, dim):
        y = y + wqkv[:, ci:ci + 1] * x[ci:ci + 1, :]
    y = y + bqkv_ref[...]                         # (C3, 1) -> broadcast (C3, N)

    # ---- depthwise 3x3 conv: in-register lane shifts + index masks ----
    h_idx = hidx_ref[...]                         # (1, N) int32 row-in-image
    w_idx = widx_ref[...]                         # (1, N) int32 col-in-image
    wdw = wdw_ref[...]                            # (C3, 9), tap t = (dy+1)*3+(dx+1)
    acc = jnp.zeros((C3, N), jnp.float32) + bdw_ref[...]
    for dy in (-1, 0, 1):
        for dx in (-1, 0, 1):
            t = (dy + 1) * 3 + (dx + 1)
            shifted = _shift_lanes(y, dy * W + dx)
            term = shifted * wdw[:, t:t + 1]
            mask = None
            if dy == -1:
                mask = h_idx >= 1
            elif dy == 1:
                mask = h_idx <= H - 2
            if dx == -1:
                m2 = w_idx >= 1
                mask = m2 if mask is None else (mask & m2)
            elif dx == 1:
                m2 = w_idx <= W - 2
                mask = m2 if mask is None else (mask & m2)
            if mask is not None:
                term = jnp.where(mask, term, 0.0)
            acc = acc + term

    # ---- channel attention, all heads at once via block-diagonal mask ----
    temp = temp_ref[...]                          # (dim, 1) per-row temperature
    hmask = hmask_ref[...]                        # (dim, dim) 1.0 on same-head blocks
    outs = []
    for b in range(B):
        base = b * HW
        q = acc[0 * dim:1 * dim, base:base + HW]  # (dim, HW)
        k = acc[1 * dim:2 * dim, base:base + HW]
        v = acc[2 * dim:3 * dim, base:base + HW]

        qn = q / jnp.maximum(
            jnp.sqrt(jnp.sum(q * q, axis=-1, keepdims=True)), 1e-12)
        kn = k / jnp.maximum(
            jnp.sqrt(jnp.sum(k * k, axis=-1, keepdims=True)), 1e-12)

        # S[i, j] = <qn[i], kn[j]>, built column-wise with lane reductions.
        cols = [jnp.sum(qn * kn[j:j + 1, :], axis=-1, keepdims=True)
                for j in range(dim)]
        s = jnp.concatenate(cols, axis=1)                   # (dim, dim)
        s = jnp.where(hmask > 0.5, s * temp, -1e30)         # per-head blocks only
        m = jnp.max(s, axis=-1, keepdims=True)
        e = jnp.exp(s - m)
        a = e / jnp.sum(e, axis=-1, keepdims=True)          # 0 off-block

        # out = A @ v as broadcast-MACs (K = dim is far below MXU width).
        o = a[:, 0:1] * v[0:1, :]
        for j in range(1, dim):
            o = o + a[:, j:j + 1] * v[j:j + 1, :]
        outs.append(o)
    att = jnp.concatenate(outs, axis=1) if B > 1 else outs[0]   # (dim, N)

    # ---- project_out 1x1 conv: VPU broadcast-MACs ----
    wpo = wpo_ref[...]                            # (dim, dim)
    out = wpo[:, 0:1] * att[0:1, :]
    for ci in range(1, dim):
        out = out + wpo[:, ci:ci + 1] * att[ci:ci + 1, :]
    out = out + bpo_ref[...]
    o_ref[...] = out.astype(o_ref.dtype)


def attention_forward(x_nchw, params, num_heads):
    """Attention.forward; input/output are NCHW like the PyTorch module."""
    wqkv, bqkv, wdw, bdw, wpo, bpo, temperature = params
    B, dim, H, W = x_nchw.shape
    C3 = 3 * dim
    HW = H * W
    N = B * HW
    ch = dim // num_heads

    # Channel-major lane-dense layout for the kernel: (C, B*H*W).
    x_cm = jnp.transpose(x_nchw, (1, 0, 2, 3)).reshape(dim, N)
    wdw_cm = wdw.reshape(C3, 9)

    # Wrapper-side constant tables (avoids in-kernel integer div/mod).
    hw = np.arange(N) % HW
    h_idx = (hw // W).astype(np.int32).reshape(1, N)
    w_idx = (hw % W).astype(np.int32).reshape(1, N)
    head_of = np.arange(dim) // ch
    hmask = (head_of[:, None] == head_of[None, :]).astype(np.float32)
    temp_full = jnp.repeat(temperature.reshape(num_heads), ch)
    temp_full = temp_full.reshape(dim, 1).astype(jnp.float32)

    kernel = functools.partial(_attention_kernel, dim, num_heads, B, H, W)

    out_cm = pl.pallas_call(
        kernel,
        out_shape=jax.ShapeDtypeStruct((dim, N), x_nchw.dtype),
        grid_spec=pltpu.PrefetchScalarGridSpec(
            num_scalar_prefetch=0,
            grid=(1,),                       # whole batch in one grid step
            in_specs=[
                pl.BlockSpec((dim, N), lambda i: (0, 0)),     # x_cm
                pl.BlockSpec((C3, dim), lambda i: (0, 0)),    # wqkv
                pl.BlockSpec((C3, 1), lambda i: (0, 0)),      # bqkv
                pl.BlockSpec((C3, 9), lambda i: (0, 0)),      # wdw
                pl.BlockSpec((C3, 1), lambda i: (0, 0)),      # bdw
                pl.BlockSpec((dim, dim), lambda i: (0, 0)),   # wpo
                pl.BlockSpec((dim, 1), lambda i: (0, 0)),     # bpo
                pl.BlockSpec((dim, 1), lambda i: (0, 0)),     # temperature/row
                pl.BlockSpec((dim, dim), lambda i: (0, 0)),   # head block mask
                pl.BlockSpec((1, N), lambda i: (0, 0)),       # h index table
                pl.BlockSpec((1, N), lambda i: (0, 0)),       # w index table
            ],
            out_specs=pl.BlockSpec((dim, N), lambda i: (0, 0)),
        ),
        compiler_params=pltpu.CompilerParams(
            dimension_semantics=("arbitrary",)),
    )(x_cm, wqkv, bqkv.reshape(C3, 1), wdw_cm, bdw.reshape(C3, 1),
      wpo, bpo.reshape(dim, 1), temp_full,
      jnp.asarray(hmask), jnp.asarray(h_idx), jnp.asarray(w_idx))

    return jnp.transpose(out_cm.reshape(dim, B, H, W), (1, 0, 2, 3))


def reference(x, params, num_heads):
    """Pure-JAX reference mirroring the PyTorch Attention.forward."""
    wqkv, bqkv, wdw, bdw, wpo, bpo, temperature = params
    B, C, H, W = x.shape
    C3 = 3 * C
    ch = C // num_heads
    qkv = jnp.einsum('oc,bchw->bohw', wqkv, x) + bqkv[None, :, None, None]
    qkv = lax.conv_general_dilated(
        qkv, wdw.reshape(C3, 1, 3, 3), (1, 1), ((1, 1), (1, 1)),
        dimension_numbers=('NCHW', 'OIHW', 'NCHW'),
        feature_group_count=C3) + bdw[None, :, None, None]
    q, k, v = jnp.split(qkv, 3, axis=1)
    q = q.reshape(B, num_heads, ch, H * W)
    k = k.reshape(B, num_heads, ch, H * W)
    v = v.reshape(B, num_heads, ch, H * W)
    qn = q / jnp.maximum(jnp.sqrt(jnp.sum(q * q, -1, keepdims=True)), 1e-12)
    kn = k / jnp.maximum(jnp.sqrt(jnp.sum(k * k, -1, keepdims=True)), 1e-12)
    attn = jnp.einsum('bhcd,bhed->bhce', qn, kn) * temperature[None]
    attn = jax.nn.softmax(attn, axis=-1)
    out = jnp.einsum('bhce,bhed->bhcd', attn, v)
    out = out.reshape(B, C, H, W)
    return jnp.einsum('oc,bchw->bohw', wpo, out) + bpo[None, :, None, None]


if __name__ == "__main__":
    # Module config: dim=4, num_heads=2, bias=True.
    B, dim, H, W = 2, 4, 16, 16
    num_heads = 2
    C3 = 3 * dim

    key = jax.random.PRNGKey(0)
    ks = jax.random.split(key, 8)
    x = jax.random.normal(ks[0], (B, dim, H, W), jnp.float32)
    # Synthetic parameters (shapes from Attention.__init__, 1x1 convs squeezed):
    wqkv = jax.random.normal(ks[1], (C3, dim), jnp.float32) * 0.2
    bqkv = jax.random.normal(ks[2], (C3,), jnp.float32) * 0.05
    wdw = jax.random.normal(ks[3], (C3, 3, 3), jnp.float32) * 0.2
    bdw = jax.random.normal(ks[4], (C3,), jnp.float32) * 0.05
    wpo = jax.random.normal(ks[5], (dim, dim), jnp.float32) * 0.2
    bpo = jax.random.normal(ks[6], (dim,), jnp.float32) * 0.05
    temperature = 1.0 + 0.5 * jax.random.normal(
        ks[7], (num_heads, 1, 1), jnp.float32)
    params = (wqkv, bqkv, wdw, bdw, wpo, bpo, temperature)

    out = jax.block_until_ready(attention_forward(x, params, num_heads))
    ref = jax.block_until_ready(reference(x, params, num_heads))

    assert out.shape == (B, dim, H, W), out.shape
    if not bool(jnp.allclose(out, ref, atol=1e-4, rtol=1e-4)):
        max_err = float(jnp.max(jnp.abs(out - ref)))
        raise AssertionError(f"Pallas kernel mismatch vs reference, "
                             f"max abs err = {max_err}")
    print("KERNEL_OK")
</pallas_src>

<mosaic_0001>
module attributes {stable_mosaic.version = 11 : i64} {
  func.func @_attention_kernel(%arg0: i32, %arg1: memref<4x512xf32, #tpu.memory_space<vmem>>, %arg2: memref<12x4xf32, #tpu.memory_space<vmem>>, %arg3: memref<12x1xf32, #tpu.memory_space<vmem>>, %arg4: memref<12x9xf32, #tpu.memory_space<vmem>>, %arg5: memref<12x1xf32, #tpu.memory_space<vmem>>, %arg6: memref<4x4xf32, #tpu.memory_space<vmem>>, %arg7: memref<4x1xf32, #tpu.memory_space<vmem>>, %arg8: memref<4x1xf32, #tpu.memory_space<vmem>>, %arg9: memref<4x4xf32, #tpu.memory_space<vmem>>, %arg10: memref<1x512xi32, #tpu.memory_space<vmem>>, %arg11: memref<1x512xi32, #tpu.memory_space<vmem>>, %arg12: memref<4x512xf32, #tpu.memory_space<vmem>>) attributes {dimension_semantics = [#tpu.dimension_semantics<arbitrary>], iteration_bounds = array<i64: 1>, scalar_prefetch = 0 : i64, scratch_operands = 0 : i64, tpu.core_type = #tpu.core_type<tc>, window_params = [{pipeline_mode = #tpu.pipeline_mode<synchronous>, transform_indices = @transform_0, window_bounds = array<i64: 4, 512>}, {pipeline_mode = #tpu.pipeline_mode<synchronous>, transform_indices = @transform_1, window_bounds = array<i64: 12, 4>}, {pipeline_mode = #tpu.pipeline_mode<synchronous>, transform_indices = @transform_2, window_bounds = array<i64: 12, 1>}, {pipeline_mode = #tpu.pipeline_mode<synchronous>, transform_indices = @transform_3, window_bounds = array<i64: 12, 9>}, {pipeline_mode = #tpu.pipeline_mode<synchronous>, transform_indices = @transform_4, window_bounds = array<i64: 12, 1>}, {pipeline_mode = #tpu.pipeline_mode<synchronous>, transform_indices = @transform_5, window_bounds = array<i64: 4, 4>}, {pipeline_mode = #tpu.pipeline_mode<synchronous>, transform_indices = @transform_6, window_bounds = array<i64: 4, 1>}, {pipeline_mode = #tpu.pipeline_mode<synchronous>, transform_indices = @transform_7, window_bounds = array<i64: 4, 1>}, {pipeline_mode = #tpu.pipeline_mode<synchronous>, transform_indices = @transform_8, window_bounds = array<i64: 4, 4>}, {pipeline_mode = #tpu.pipeline_mode<synchronous>, transform_indices = @transform_9, window_bounds = array<i64: 1, 512>}, {pipeline_mode = #tpu.pipeline_mode<synchronous>, transform_indices = @transform_10, window_bounds = array<i64: 1, 512>}, {pipeline_mode = #tpu.pipeline_mode<synchronous>, transform_indices = @transform_11, window_bounds = array<i64: 4, 512>}]} {
    %c0 = arith.constant 0 : index
    %c0_0 = arith.constant 0 : index
    %0 = vector.load %arg1[%c0, %c0_0] : memref<4x512xf32, #tpu.memory_space<vmem>>, vector<4x512xf32>
    %c0_1 = arith.constant 0 : index
    %c0_2 = arith.constant 0 : index
    %1 = vector.load %arg2[%c0_1, %c0_2] : memref<12x4xf32, #tpu.memory_space<vmem>>, vector<12x4xf32>
    %2 = vector.extract_strided_slice %1 {offsets = [0, 0], sizes = [12, 1], strides = [1, 1]} : vector<12x4xf32> to vector<12x1xf32>
    %3 = vector.extract_strided_slice %0 {offsets = [0, 0], sizes = [1, 512], strides = [1, 1]} : vector<4x512xf32> to vector<1x512xf32>
    %4 = vector.broadcast %2 : vector<12x1xf32> to vector<12x512xf32>
    %5 = vector.broadcast %3 : vector<1x512xf32> to vector<12x512xf32>
    %6 = arith.mulf %4, %5 : vector<12x512xf32>
    %7 = vector.extract_strided_slice %1 {offsets = [0, 1], sizes = [12, 1], strides = [1, 1]} : vector<12x4xf32> to vector<12x1xf32>
    %8 = vector.extract_strided_slice %0 {offsets = [1, 0], sizes = [1, 512], strides = [1, 1]} : vector<4x512xf32> to vector<1x512xf32>
    %9 = vector.broadcast %7 : vector<12x1xf32> to vector<12x512xf32>
    %10 = vector.broadcast %8 : vector<1x512xf32> to vector<12x512xf32>
    %11 = arith.mulf %9, %10 : vector<12x512xf32>
    %12 = arith.addf %6, %11 : vector<12x512xf32>
    %13 = vector.extract_strided_slice %1 {offsets = [0, 2], sizes = [12, 1], strides = [1, 1]} : vector<12x4xf32> to vector<12x1xf32>
    %14 = vector.extract_strided_slice %0 {offsets = [2, 0], sizes = [1, 512], strides = [1, 1]} : vector<4x512xf32> to vector<1x512xf32>
    %15 = vector.broadcast %13 : vector<12x1xf32> to vector<12x512xf32>
    %16 = vector.broadcast %14 : vector<1x512xf32> to vector<12x512xf32>
    %17 = arith.mulf %15, %16 : vector<12x512xf32>
    %18 = arith.addf %12, %17 : vector<12x512xf32>
    %19 = vector.extract_strided_slice %1 {offsets = [0, 3], sizes = [12, 1], strides = [1, 1]} : vector<12x4xf32> to vector<12x1xf32>
    %20 = vector.extract_strided_slice %0 {offsets = [3, 0], sizes = [1, 512], strides = [1, 1]} : vector<4x512xf32> to vector<1x512xf32>
    %21 = vector.broadcast %19 : vector<12x1xf32> to vector<12x512xf32>
    %22 = vector.broadcast %20 : vector<1x512xf32> to vector<12x512xf32>
    %23 = arith.mulf %21, %22 : vector<12x512xf32>
    %24 = arith.addf %18, %23 : vector<12x512xf32>
    %c0_3 = arith.constant 0 : index
    %c0_4 = arith.constant 0 : index
    %25 = vector.load %arg3[%c0_3, %c0_4] : memref<12x1xf32, #tpu.memory_space<vmem>>, vector<12x1xf32>
    %26 = vector.broadcast %25 : vector<12x1xf32> to vector<12x512xf32>
    %27 = arith.addf %24, %26 : vector<12x512xf32>
    %c0_5 = arith.constant 0 : index
    %c0_6 = arith.constant 0 : index
    %28 = vector.load %arg10[%c0_5, %c0_6] : memref<1x512xi32, #tpu.memory_space<vmem>>, vector<1x512xi32>
    %c0_7 = arith.constant 0 : index
    %c0_8 = arith.constant 0 : index
    %29 = vector.load %arg11[%c0_7, %c0_8] : memref<1x512xi32, #tpu.memory_space<vmem>>, vector<1x512xi32>
    %c0_9 = arith.constant 0 : index
    %c0_10 = arith.constant 0 : index
    %30 = vector.load %arg4[%c0_9, %c0_10] : memref<12x9xf32, #tpu.memory_space<vmem>>, vector<12x9xf32>
    %cst = arith.constant 0.000000e+00 : f32
    %31 = vector.broadcast %cst : f32 to vector<12x512xf32>
    %c0_11 = arith.constant 0 : index
    %c0_12 = arith.constant 0 : index
    %32 = vector.load %arg5[%c0_11, %c0_12] : memref<12x1xf32, #tpu.memory_space<vmem>>, vector<12x1xf32>
    %33 = vector.broadcast %32 : vector<12x1xf32> to vector<12x512xf32>
    %34 = arith.addf %31, %33 : vector<12x512xf32>
    %cst_13 = arith.constant 0.000000e+00 : f32
    %35 = vector.broadcast %cst_13 : f32 to vector<12x17xf32>
    %36 = vector.extract_strided_slice %27 {offsets = [0, 0], sizes = [12, 495], strides = [1, 1]} : vector<12x512xf32> to vector<12x495xf32>
    %37 = tpu.concatenate %35, %36 in 1 : vector<12x17xf32>, vector<12x495xf32> -> vector<12x512xf32>
    %38 = vector.extract_strided_slice %30 {offsets = [0, 0], sizes = [12, 1], strides = [1, 1]} : vector<12x9xf32> to vector<12x1xf32>
    %39 = vector.broadcast %38 : vector<12x1xf32> to vector<12x512xf32>
    %40 = arith.mulf %37, %39 : vector<12x512xf32>
    %c1_i32 = arith.constant 1 : i32
    %41 = vector.broadcast %c1_i32 : i32 to vector<1x512xi32>
    %42 = arith.cmpi sge, %28, %41 : vector<1x512xi32>
    %c1_i32_14 = arith.constant 1 : i32
    %43 = vector.broadcast %c1_i32_14 : i32 to vector<1x512xi32>
    %44 = arith.cmpi sge, %29, %43 : vector<1x512xi32>
    %45 = arith.andi %42, %44 : vector<1x512xi1>
    %cst_15 = arith.constant 0.000000e+00 : f32
    %46 = vector.shape_cast %45 : vector<1x512xi1> to vector<1x512xi1>
    %47 = vector.broadcast %46 : vector<1x512xi1> to vector<12x512xi1>
    %48 = vector.broadcast %cst_15 : f32 to vector<12x512xf32>
    %49 = arith.select %47, %40, %48 : vector<12x512xi1>, vector<12x512xf32>
    %50 = arith.addf %34, %49 : vector<12x512xf32>
    %cst_16 = arith.constant 0.000000e+00 : f32
    %51 = vector.broadcast %cst_16 : f32 to vector<12x16xf32>
    %52 = vector.extract_strided_slice %27 {offsets = [0, 0], sizes = [12, 496], strides = [1, 1]} : vector<12x512xf32> to vector<12x496xf32>
    %53 = tpu.concatenate %51, %52 in 1 : vector<12x16xf32>, vector<12x496xf32> -> vector<12x512xf32>
    %54 = vector.extract_strided_slice %30 {offsets = [0, 1], sizes = [12, 1], strides = [1, 1]} : vector<12x9xf32> to vector<12x1xf32>
    %55 = vector.broadcast %54 : vector<12x1xf32> to vector<12x512xf32>
    %56 = arith.mulf %53, %55 : vector<12x512xf32>
    %c1_i32_17 = arith.constant 1 : i32
    %57 = vector.broadcast %c1_i32_17 : i32 to vector<1x512xi32>
    %58 = arith.cmpi sge, %28, %57 : vector<1x512xi32>
    %cst_18 = arith.constant 0.000000e+00 : f32
    %59 = vector.shape_cast %58 : vector<1x512xi1> to vector<1x512xi1>
    %60 = vector.broadcast %59 : vector<1x512xi1> to vector<12x512xi1>
    %61 = vector.broadcast %cst_18 : f32 to vector<12x512xf32>
    %62 = arith.select %60, %56, %61 : vector<12x512xi1>, vector<12x512xf32>
    %63 = arith.addf %50, %62 : vector<12x512xf32>
    %cst_19 = arith.constant 0.000000e+00 : f32
    %64 = vector.broadcast %cst_19 : f32 to vector<12x15xf32>
    %65 = vector.extract_strided_slice %27 {offsets = [0, 0], sizes = [12, 497], strides = [1, 1]} : vector<12x512xf32> to vector<12x497xf32>
    %66 = tpu.concatenate %64, %65 in 1 : vector<12x15xf32>, vector<12x497xf32> -> vector<12x512xf32>
    %67 = vector.extract_strided_slice %30 {offsets = [0, 2], sizes = [12, 1], strides = [1, 1]} : vector<12x9xf32> to vector<12x1xf32>
    %68 = vector.broadcast %67 : vector<12x1xf32> to vector<12x512xf32>
    %69 = arith.mulf %66, %68 : vector<12x512xf32>
    %c1_i32_20 = arith.constant 1 : i32
    %70 = vector.broadcast %c1_i32_20 : i32 to vector<1x512xi32>
    %71 = arith.cmpi sge, %28, %70 : vector<1x512xi32>
    %c14_i32 = arith.constant 14 : i32
    %72 = vector.broadcast %c14_i32 : i32 to vector<1x512xi32>
    %73 = arith.cmpi sle, %29, %72 : vector<1x512xi32>
    %74 = arith.andi %71, %73 : vector<1x512xi1>
    %cst_21 = arith.constant 0.000000e+00 : f32
    %75 = vector.shape_cast %74 : vector<1x512xi1> to vector<1x512xi1>
    %76 = vector.broadcast %75 : vector<1x512xi1> to vector<12x512xi1>
    %77 = vector.broadcast %cst_21 : f32 to vector<12x512xf32>
    %78 = arith.select %76, %69, %77 : vector<12x512xi1>, vector<12x512xf32>
    %79 = arith.addf %63, %78 : vector<12x512xf32>
    %cst_22 = arith.constant 0.000000e+00 : f32
    %80 = vector.broadcast %cst_22 : f32 to vector<12x1xf32>
    %81 = vector.extract_strided_slice %27 {offsets = [0, 0], sizes = [12, 511], strides = [1, 1]} : vector<12x512xf32> to vector<12x511xf32>
    %82 = tpu.concatenate %80, %81 in 1 : vector<12x1xf32>, vector<12x511xf32> -> vector<12x512xf32>
    %83 = vector.extract_strided_slice %30 {offsets = [0, 3], sizes = [12, 1], strides = [1, 1]} : vector<12x9xf32> to vector<12x1xf32>
    %84 = vector.broadcast %83 : vector<12x1xf32> to vector<12x512xf32>
    %85 = arith.mulf %82, %84 : vector<12x512xf32>
    %c1_i32_23 = arith.constant 1 : i32
    %86 = vector.broadcast %c1_i32_23 : i32 to vector<1x512xi32>
    %87 = arith.cmpi sge, %29, %86 : vector<1x512xi32>
    %cst_24 = arith.constant 0.000000e+00 : f32
    %88 = vector.shape_cast %87 : vector<1x512xi1> to vector<1x512xi1>
    %89 = vector.broadcast %88 : vector<1x512xi1> to vector<12x512xi1>
    %90 = vector.broadcast %cst_24 : f32 to vector<12x512xf32>
    %91 = arith.select %89, %85, %90 : vector<12x512xi1>, vector<12x512xf32>
    %92 = arith.addf %79, %91 : vector<12x512xf32>
    %93 = vector.extract_strided_slice %30 {offsets = [0, 4], sizes = [12, 1], strides = [1, 1]} : vector<12x9xf32> to vector<12x1xf32>
    %94 = vector.broadcast %93 : vector<12x1xf32> to vector<12x512xf32>
    %95 = arith.mulf %27, %94 : vector<12x512xf32>
    %96 = arith.addf %92, %95 : vector<12x512xf32>
    %cst_25 = arith.constant 0.000000e+00 : f32
    %97 = vector.broadcast %cst_25 : f32 to vector<12x1xf32>
    %98 = vector.extract_strided_slice %27 {offsets = [0, 1], sizes = [12, 511], strides = [1, 1]} : vector<12x512xf32> to vector<12x511xf32>
    %99 = tpu.concatenate %98, %97 in 1 : vector<12x511xf32>, vector<12x1xf32> -> vector<12x512xf32>
    %100 = vector.extract_strided_slice %30 {offsets = [0, 5], sizes = [12, 1], strides = [1, 1]} : vector<12x9xf32> to vector<12x1xf32>
    %101 = vector.broadcast %100 : vector<12x1xf32> to vector<12x512xf32>
    %102 = arith.mulf %99, %101 : vector<12x512xf32>
    %c14_i32_26 = arith.constant 14 : i32
    %103 = vector.broadcast %c14_i32_26 : i32 to vector<1x512xi32>
    %104 = arith.cmpi sle, %29, %103 : vector<1x512xi32>
    %cst_27 = arith.constant 0.000000e+00 : f32
    %105 = vector.shape_cast %104 : vector<1x512xi1> to vector<1x512xi1>
    %106 = vector.broadcast %105 : vector<1x512xi1> to vector<12x512xi1>
    %107 = vector.broadcast %cst_27 : f32 to vector<12x512xf32>
    %108 = arith.select %106, %102, %107 : vector<12x512xi1>, vector<12x512xf32>
    %109 = arith.addf %96, %108 : vector<12x512xf32>
    %cst_28 = arith.constant 0.000000e+00 : f32
    %110 = vector.broadcast %cst_28 : f32 to vector<12x15xf32>
    %111 = vector.extract_strided_slice %27 {offsets = [0, 15], sizes = [12, 497], strides = [1, 1]} : vector<12x512xf32> to vector<12x497xf32>
    %112 = tpu.concatenate %111, %110 in 1 : vector<12x497xf32>, vector<12x15xf32> -> vector<12x512xf32>
    %113 = vector.extract_strided_slice %30 {offsets = [0, 6], sizes = [12, 1], strides = [1, 1]} : vector<12x9xf32> to vector<12x1xf32>
    %114 = vector.broadcast %113 : vector<12x1xf32> to vector<12x512xf32>
    %115 = arith.mulf %112, %114 : vector<12x512xf32>
    %c14_i32_29 = arith.constant 14 : i32
    %116 = vector.broadcast %c14_i32_29 : i32 to vector<1x512xi32>
    %117 = arith.cmpi sle, %28, %116 : vector<1x512xi32>
    %c1_i32_30 = arith.constant 1 : i32
    %118 = vector.broadcast %c1_i32_30 : i32 to vector<1x512xi32>
    %119 = arith.cmpi sge, %29, %118 : vector<1x512xi32>
    %120 = arith.andi %117, %119 : vector<1x512xi1>
    %cst_31 = arith.constant 0.000000e+00 : f32
    %121 = vector.shape_cast %120 : vector<1x512xi1> to vector<1x512xi1>
    %122 = vector.broadcast %121 : vector<1x512xi1> to vector<12x512xi1>
    %123 = vector.broadcast %cst_31 : f32 to vector<12x512xf32>
    %124 = arith.select %122, %115, %123 : vector<12x512xi1>, vector<12x512xf32>
    %125 = arith.addf %109, %124 : vector<12x512xf32>
    %cst_32 = arith.constant 0.000000e+00 : f32
    %126 = vector.broadcast %cst_32 : f32 to vector<12x16xf32>
    %127 = vector.extract_strided_slice %27 {offsets = [0, 16], sizes = [12, 496], strides = [1, 1]} : vector<12x512xf32> to vector<12x496xf32>
    %128 = tpu.concatenate %127, %126 in 1 : vector<12x496xf32>, vector<12x16xf32> -> vector<12x512xf32>
    %129 = vector.extract_strided_slice %30 {offsets = [0, 7], sizes = [12, 1], strides = [1, 1]} : vector<12x9xf32> to vector<12x1xf32>
    %130 = vector.broadcast %129 : vector<12x1xf32> to vector<12x512xf32>
    %131 = arith.mulf %128, %130 : vector<12x512xf32>
    %c14_i32_33 = arith.constant 14 : i32
    %132 = vector.broadcast %c14_i32_33 : i32 to vector<1x512xi32>
    %133 = arith.cmpi sle, %28, %132 : vector<1x512xi32>
    %cst_34 = arith.constant 0.000000e+00 : f32
    %134 = vector.shape_cast %133 : vector<1x512xi1> to vector<1x512xi1>
    %135 = vector.broadcast %134 : vector<1x512xi1> to vector<12x512xi1>
    %136 = vector.broadcast %cst_34 : f32 to vector<12x512xf32>
    %137 = arith.select %135, %131, %136 : vector<12x512xi1>, vector<12x512xf32>
    %138 = arith.addf %125, %137 : vector<12x512xf32>
    %cst_35 = arith.constant 0.000000e+00 : f32
    %139 = vector.broadcast %cst_35 : f32 to vector<12x17xf32>
    %140 = vector.extract_strided_slice %27 {offsets = [0, 17], sizes = [12, 495], strides = [1, 1]} : vector<12x512xf32> to vector<12x495xf32>
    %141 = tpu.concatenate %140, %139 in 1 : vector<12x495xf32>, vector<12x17xf32> -> vector<12x512xf32>
    %142 = vector.extract_strided_slice %30 {offsets = [0, 8], sizes = [12, 1], strides = [1, 1]} : vector<12x9xf32> to vector<12x1xf32>
    %143 = vector.broadcast %142 : vector<12x1xf32> to vector<12x512xf32>
    %144 = arith.mulf %141, %143 : vector<12x512xf32>
    %c14_i32_36 = arith.constant 14 : i32
    %145 = vector.broadcast %c14_i32_36 : i32 to vector<1x512xi32>
    %146 = arith.cmpi sle, %28, %145 : vector<1x512xi32>
    %c14_i32_37 = arith.constant 14 : i32
    %147 = vector.broadcast %c14_i32_37 : i32 to vector<1x512xi32>
    %148 = arith.cmpi sle, %29, %147 : vector<1x512xi32>
    %149 = arith.andi %146, %148 : vector<1x512xi1>
    %cst_38 = arith.constant 0.000000e+00 : f32
    %150 = vector.shape_cast %149 : vector<1x512xi1> to vector<1x512xi1>
    %151 = vector.broadcast %150 : vector<1x512xi1> to vector<12x512xi1>
    %152 = vector.broadcast %cst_38 : f32 to vector<12x512xf32>
    %153 = arith.select %151, %144, %152 : vector<12x512xi1>, vector<12x512xf32>
    %154 = arith.addf %138, %153 : vector<12x512xf32>
    %c0_39 = arith.constant 0 : index
    %c0_40 = arith.constant 0 : index
    %155 = vector.load %arg8[%c0_39, %c0_40] : memref<4x1xf32, #tpu.memory_space<vmem>>, vector<4x1xf32>
    %c0_41 = arith.constant 0 : index
    %c0_42 = arith.constant 0 : index
    %156 = vector.load %arg9[%c0_41, %c0_42] : memref<4x4xf32, #tpu.memory_space<vmem>>, vector<4x4xf32>
    %157 = vector.extract_strided_slice %154 {offsets = [0, 0], sizes = [4, 256], strides = [1, 1]} : vector<12x512xf32> to vector<4x256xf32>
    %158 = vector.extract_strided_slice %154 {offsets = [4, 0], sizes = [4, 256], strides = [1, 1]} : vector<12x512xf32> to vector<4x256xf32>
    %159 = vector.extract_strided_slice %154 {offsets = [8, 0], sizes = [4, 256], strides = [1, 1]} : vector<12x512xf32> to vector<4x256xf32>
    %160 = arith.mulf %157, %157 : vector<4x256xf32>
    %cst_43 = arith.constant dense<0.000000e+00> : vector<4xf32>
    %161 = vector.multi_reduction <add>, %160, %cst_43 [1] : vector<4x256xf32> to vector<4xf32>
    %162 = vector.shape_cast %161 : vector<4xf32> to vector<4x1xf32>
    %163 = math.sqrt %162 : vector<4x1xf32>
    %cst_44 = arith.constant 9.99999996E-13 : f32
    %164 = vector.broadcast %cst_44 : f32 to vector<4x1xf32>
    %165 = arith.maximumf %163, %164 : vector<4x1xf32>
    %166 = vector.broadcast %165 : vector<4x1xf32> to vector<4x256xf32>
    %167 = arith.divf %157, %166 : vector<4x256xf32>
    %168 = arith.mulf %158, %158 : vector<4x256xf32>
    %cst_45 = arith.constant dense<0.000000e+00> : vector<4xf32>
    %169 = vector.multi_reduction <add>, %168, %cst_45 [1] : vector<4x256xf32> to vector<4xf32>
    %170 = vector.shape_cast %169 : vector<4xf32> to vector<4x1xf32>
    %171 = math.sqrt %170 : vector<4x1xf32>
    %cst_46 = arith.constant 9.99999996E-13 : f32
    %172 = vector.broadcast %cst_46 : f32 to vector<4x1xf32>
    %173 = arith.maximumf %171, %172 : vector<4x1xf32>
    %174 = vector.broadcast %173 : vector<4x1xf32> to vector<4x256xf32>
    %175 = arith.divf %158, %174 : vector<4x256xf32>
    %176 = vector.extract_strided_slice %175 {offsets = [0, 0], sizes = [1, 256], strides = [1, 1]} : vector<4x256xf32> to vector<1x256xf32>
    %177 = vector.broadcast %176 : vector<1x256xf32> to vector<4x256xf32>
    %178 = arith.mulf %167, %177 : vector<4x256xf32>
    %cst_47 = arith.constant dense<0.000000e+00> : vector<4xf32>
    %179 = vector.multi_reduction <add>, %178, %cst_47 [1] : vector<4x256xf32> to vector<4xf32>
    %180 = vector.shape_cast %179 : vector<4xf32> to vector<4x1xf32>
    %181 = vector.extract_strided_slice %175 {offsets = [1, 0], sizes = [1, 256], strides = [1, 1]} : vector<4x256xf32> to vector<1x256xf32>
    %182 = vector.broadcast %181 : vector<1x256xf32> to vector<4x256xf32>
    %183 = arith.mulf %167, %182 : vector<4x256xf32>
    %cst_48 = arith.constant dense<0.000000e+00> : vector<4xf32>
    %184 = vector.multi_reduction <add>, %183, %cst_48 [1] : vector<4x256xf32> to vector<4xf32>
    %185 = vector.shape_cast %184 : vector<4xf32> to vector<4x1xf32>
    %186 = vector.extract_strided_slice %175 {offsets = [2, 0], sizes = [1, 256], strides = [1, 1]} : vector<4x256xf32> to vector<1x256xf32>
    %187 = vector.broadcast %186 : vector<1x256xf32> to vector<4x256xf32>
    %188 = arith.mulf %167, %187 : vector<4x256xf32>
    %cst_49 = arith.constant dense<0.000000e+00> : vector<4xf32>
    %189 = vector.multi_reduction <add>, %188, %cst_49 [1] : vector<4x256xf32> to vector<4xf32>
    %190 = vector.shape_cast %189 : vector<4xf32> to vector<4x1xf32>
    %191 = vector.extract_strided_slice %175 {offsets = [3, 0], sizes = [1, 256], strides = [1, 1]} : vector<4x256xf32> to vector<1x256xf32>
    %192 = vector.broadcast %191 : vector<1x256xf32> to vector<4x256xf32>
    %193 = arith.mulf %167, %192 : vector<4x256xf32>
    %cst_50 = arith.constant dense<0.000000e+00> : vector<4xf32>
    %194 = vector.multi_reduction <add>, %193, %cst_50 [1] : vector<4x256xf32> to vector<4xf32>
    %195 = vector.shape_cast %194 : vector<4xf32> to vector<4x1xf32>
    %196 = tpu.concatenate %180, %185, %190, %195 in 1 : vector<4x1xf32>, vector<4x1xf32>, vector<4x1xf32>, vector<4x1xf32> -> vector<4x4xf32>
    %cst_51 = arith.constant 5.000000e-01 : f32
    %197 = vector.broadcast %cst_51 : f32 to vector<4x4xf32>
    %198 = arith.cmpf ogt, %156, %197 : vector<4x4xf32>
    %199 = vector.broadcast %155 : vector<4x1xf32> to vector<4x4xf32>
    %200 = arith.mulf %196, %199 : vector<4x4xf32>
    %cst_52 = arith.constant -1.000000e+30 : f32
    %201 = vector.broadcast %cst_52 : f32 to vector<4x4xf32>
    %202 = arith.select %198, %200, %201 : vector<4x4xi1>, vector<4x4xf32>
    %cst_53 = arith.constant dense<0xFF800000> : vector<4xf32>
    %203 = vector.multi_reduction <maximumf>, %202, %cst_53 [1] : vector<4x4xf32> to vector<4xf32>
    %204 = vector.shape_cast %203 : vector<4xf32> to vector<4x1xf32>
    %205 = vector.broadcast %204 : vector<4x1xf32> to vector<4x4xf32>
    %206 = arith.subf %202, %205 : vector<4x4xf32>
    %207 = math.exp %206 : vector<4x4xf32>
    %cst_54 = arith.constant dense<0.000000e+00> : vector<4xf32>
    %208 = vector.multi_reduction <add>, %207, %cst_54 [1] : vector<4x4xf32> to vector<4xf32>
    %209 = vector.shape_cast %208 : vector<4xf32> to vector<4x1xf32>
    %210 = vector.broadcast %209 : vector<4x1xf32> to vector<4x4xf32>
    %211 = arith.divf %207, %210 : vector<4x4xf32>
    %212 = vector.extract_strided_slice %211 {offsets = [0, 0], sizes = [4, 1], strides = [1, 1]} : vector<4x4xf32> to vector<4x1xf32>
    %213 = vector.extract_strided_slice %159 {offsets = [0, 0], sizes = [1, 256], strides = [1, 1]} : vector<4x256xf32> to vector<1x256xf32>
    %214 = vector.broadcast %212 : vector<4x1xf32> to vector<4x256xf32>
    %215 = vector.broadcast %213 : vector<1x256xf32> to vector<4x256xf32>
    %216 = arith.mulf %214, %215 : vector<4x256xf32>
    %217 = vector.extract_strided_slice %211 {offsets = [0, 1], sizes = [4, 1], strides = [1, 1]} : vector<4x4xf32> to vector<4x1xf32>
    %218 = vector.extract_strided_slice %159 {offsets = [1, 0], sizes = [1, 256], strides = [1, 1]} : vector<4x256xf32> to vector<1x256xf32>
    %219 = vector.broadcast %217 : vector<4x1xf32> to vector<4x256xf32>
    %220 = vector.broadcast %218 : vector<1x256xf32> to vector<4x256xf32>
    %221 = arith.mulf %219, %220 : vector<4x256xf32>
    %222 = arith.addf %216, %221 : vector<4x256xf32>
    %223 = vector.extract_strided_slice %211 {offsets = [0, 2], sizes = [4, 1], strides = [1, 1]} : vector<4x4xf32> to vector<4x1xf32>
    %224 = vector.extract_strided_slice %159 {offsets = [2, 0], sizes = [1, 256], strides = [1, 1]} : vector<4x256xf32> to vector<1x256xf32>
    %225 = vector.broadcast %223 : vector<4x1xf32> to vector<4x256xf32>
    %226 = vector.broadcast %224 : vector<1x256xf32> to vector<4x256xf32>
    %227 = arith.mulf %225, %226 : vector<4x256xf32>
    %228 = arith.addf %222, %227 : vector<4x256xf32>
    %229 = vector.extract_strided_slice %211 {offsets = [0, 3], sizes = [4, 1], strides = [1, 1]} : vector<4x4xf32> to vector<4x1xf32>
    %230 = vector.extract_strided_slice %159 {offsets = [3, 0], sizes = [1, 256], strides = [1, 1]} : vector<4x256xf32> to vector<1x256xf32>
    %231 = vector.broadcast %229 : vector<4x1xf32> to vector<4x256xf32>
    %232 = vector.broadcast %230 : vector<1x256xf32> to vector<4x256xf32>
    %233 = arith.mulf %231, %232 : vector<4x256xf32>
    %234 = arith.addf %228, %233 : vector<4x256xf32>
    %235 = vector.extract_strided_slice %154 {offsets = [0, 256], sizes = [4, 256], strides = [1, 1]} : vector<12x512xf32> to vector<4x256xf32>
    %236 = vector.extract_strided_slice %154 {offsets = [4, 256], sizes = [4, 256], strides = [1, 1]} : vector<12x512xf32> to vector<4x256xf32>
    %237 = vector.extract_strided_slice %154 {offsets = [8, 256], sizes = [4, 256], strides = [1, 1]} : vector<12x512xf32> to vector<4x256xf32>
    %238 = arith.mulf %235, %235 : vector<4x256xf32>
    %cst_55 = arith.constant dense<0.000000e+00> : vector<4xf32>
    %239 = vector.multi_reduction <add>, %238, %cst_55 [1] : vector<4x256xf32> to vector<4xf32>
    %240 = vector.shape_cast %239 : vector<4xf32> to vector<4x1xf32>
    %241 = math.sqrt %240 : vector<4x1xf32>
    %cst_56 = arith.constant 9.99999996E-13 : f32
    %242 = vector.broadcast %cst_56 : f32 to vector<4x1xf32>
    %243 = arith.maximumf %241, %242 : vector<4x1xf32>
    %244 = vector.broadcast %243 : vector<4x1xf32> to vector<4x256xf32>
    %245 = arith.divf %235, %244 : vector<4x256xf32>
    %246 = arith.mulf %236, %236 : vector<4x256xf32>
    %cst_57 = arith.constant dense<0.000000e+00> : vector<4xf32>
    %247 = vector.multi_reduction <add>, %246, %cst_57 [1] : vector<4x256xf32> to vector<4xf32>
    %248 = vector.shape_cast %247 : vector<4xf32> to vector<4x1xf32>
    %249 = math.sqrt %248 : vector<4x1xf32>
    %cst_58 = arith.constant 9.99999996E-13 : f32
    %250 = vector.broadcast %cst_58 : f32 to vector<4x1xf32>
    %251 = arith.maximumf %249, %250 : vector<4x1xf32>
    %252 = vector.broadcast %251 : vector<4x1xf32> to vector<4x256xf32>
    %253 = arith.divf %236, %252 : vector<4x256xf32>
    %254 = vector.extract_strided_slice %253 {offsets = [0, 0], sizes = [1, 256], strides = [1, 1]} : vector<4x256xf32> to vector<1x256xf32>
    %255 = vector.broadcast %254 : vector<1x256xf32> to vector<4x256xf32>
    %256 = arith.mulf %245, %255 : vector<4x256xf32>
    %cst_59 = arith.constant dense<0.000000e+00> : vector<4xf32>
    %257 = vector.multi_reduction <add>, %256, %cst_59 [1] : vector<4x256xf32> to vector<4xf32>
    %258 = vector.shape_cast %257 : vector<4xf32> to vector<4x1xf32>
    %259 = vector.extract_strided_slice %253 {offsets = [1, 0], sizes = [1, 256], strides = [1, 1]} : vector<4x256xf32> to vector<1x256xf32>
    %260 = vector.broadcast %259 : vector<1x256xf32> to vector<4x256xf32>
    %261 = arith.mulf %245, %260 : vector<4x256xf32>
    %cst_60 = arith.constant dense<0.000000e+00> : vector<4xf32>
    %262 = vector.multi_reduction <add>, %261, %cst_60 [1] : vector<4x256xf32> to vector<4xf32>
    %263 = vector.shape_cast %262 : vector<4xf32> to vector<4x1xf32>
    %264 = vector.extract_strided_slice %253 {offsets = [2, 0], sizes = [1, 256], strides = [1, 1]} : vector<4x256xf32> to vector<1x256xf32>
    %265 = vector.broadcast %264 : vector<1x256xf32> to vector<4x256xf32>
    %266 = arith.mulf %245, %265 : vector<4x256xf32>
    %cst_61 = arith.constant dense<0.000000e+00> : vector<4xf32>
    %267 = vector.multi_reduction <add>, %266, %cst_61 [1] : vector<4x256xf32> to vector<4xf32>
    %268 = vector.shape_cast %267 : vector<4xf32> to vector<4x1xf32>
    %269 = vector.extract_strided_slice %253 {offsets = [3, 0], sizes = [1, 256], strides = [1, 1]} : vector<4x256xf32> to vector<1x256xf32>
    %270 = vector.broadcast %269 : vector<1x256xf32> to vector<4x256xf32>
    %271 = arith.mulf %245, %270 : vector<4x256xf32>
    %cst_62 = arith.constant dense<0.000000e+00> : vector<4xf32>
    %272 = vector.multi_reduction <add>, %271, %cst_62 [1] : vector<4x256xf32> to vector<4xf32>
    %273 = vector.shape_cast %272 : vector<4xf32> to vector<4x1xf32>
    %274 = tpu.concatenate %258, %263, %268, %273 in 1 : vector<4x1xf32>, vector<4x1xf32>, vector<4x1xf32>, vector<4x1xf32> -> vector<4x4xf32>
    %cst_63 = arith.constant 5.000000e-01 : f32
    %275 = vector.broadcast %cst_63 : f32 to vector<4x4xf32>
    %276 = arith.cmpf ogt, %156, %275 : vector<4x4xf32>
    %277 = vector.broadcast %155 : vector<4x1xf32> to vector<4x4xf32>
    %278 = arith.mulf %274, %277 : vector<4x4xf32>
    %cst_64 = arith.constant -1.000000e+30 : f32
    %279 = vector.broadcast %cst_64 : f32 to vector<4x4xf32>
    %280 = arith.select %276, %278, %279 : vector<4x4xi1>, vector<4x4xf32>
    %cst_65 = arith.constant dense<0xFF800000> : vector<4xf32>
    %281 = vector.multi_reduction <maximumf>, %280, %cst_65 [1] : vector<4x4xf32> to vector<4xf32>
    %282 = vector.shape_cast %281 : vector<4xf32> to vector<4x1xf32>
    %283 = vector.broadcast %282 : vector<4x1xf32> to vector<4x4xf32>
    %284 = arith.subf %280, %283 : vector<4x4xf32>
    %285 = math.exp %284 : vector<4x4xf32>
    %cst_66 = arith.constant dense<0.000000e+00> : vector<4xf32>
    %286 = vector.multi_reduction <add>, %285, %cst_66 [1] : vector<4x4xf32> to vector<4xf32>
    %287 = vector.shape_cast %286 : vector<4xf32> to vector<4x1xf32>
    %288 = vector.broadcast %287 : vector<4x1xf32> to vector<4x4xf32>
    %289 = arith.divf %285, %288 : vector<4x4xf32>
    %290 = vector.extract_strided_slice %289 {offsets = [0, 0], sizes = [4, 1], strides = [1, 1]} : vector<4x4xf32> to vector<4x1xf32>
    %291 = vector.extract_strided_slice %237 {offsets = [0, 0], sizes = [1, 256], strides = [1, 1]} : vector<4x256xf32> to vector<1x256xf32>
    %292 = vector.broadcast %290 : vector<4x1xf32> to vector<4x256xf32>
    %293 = vector.broadcast %291 : vector<1x256xf32> to vector<4x256xf32>
    %294 = arith.mulf %292, %293 : vector<4x256xf32>
    %295 = vector.extract_strided_slice %289 {offsets = [0, 1], sizes = [4, 1], strides = [1, 1]} : vector<4x4xf32> to vector<4x1xf32>
    %296 = vector.extract_strided_slice %237 {offsets = [1, 0], sizes = [1, 256], strides = [1, 1]} : vector<4x256xf32> to vector<1x256xf32>
    %297 = vector.broadcast %295 : vector<4x1xf32> to vector<4x256xf32>
    %298 = vector.broadcast %296 : vector<1x256xf32> to vector<4x256xf32>
    %299 = arith.mulf %297, %298 : vector<4x256xf32>
    %300 = arith.addf %294, %299 : vector<4x256xf32>
    %301 = vector.extract_strided_slice %289 {offsets = [0, 2], sizes = [4, 1], strides = [1, 1]} : vector<4x4xf32> to vector<4x1xf32>
    %302 = vector.extract_strided_slice %237 {offsets = [2, 0], sizes = [1, 256], strides = [1, 1]} : vector<4x256xf32> to vector<1x256xf32>
    %303 = vector.broadcast %301 : vector<4x1xf32> to vector<4x256xf32>
    %304 = vector.broadcast %302 : vector<1x256xf32> to vector<4x256xf32>
    %305 = arith.mulf %303, %304 : vector<4x256xf32>
    %306 = arith.addf %300, %305 : vector<4x256xf32>
    %307 = vector.extract_strided_slice %289 {offsets = [0, 3], sizes = [4, 1], strides = [1, 1]} : vector<4x4xf32> to vector<4x1xf32>
    %308 = vector.extract_strided_slice %237 {offsets = [3, 0], sizes = [1, 256], strides = [1, 1]} : vector<4x256xf32> to vector<1x256xf32>
    %309 = vector.broadcast %307 : vector<4x1xf32> to vector<4x256xf32>
    %310 = vector.broadcast %308 : vector<1x256xf32> to vector<4x256xf32>
    %311 = arith.mulf %309, %310 : vector<4x256xf32>
    %312 = arith.addf %306, %311 : vector<4x256xf32>
    %313 = tpu.concatenate %234, %312 in 1 : vector<4x256xf32>, vector<4x256xf32> -> vector<4x512xf32>
    %c0_67 = arith.constant 0 : index
    %c0_68 = arith.constant 0 : index
    %314 = vector.load %arg6[%c0_67, %c0_68] : memref<4x4xf32, #tpu.memory_space<vmem>>, vector<4x4xf32>
    %315 = vector.extract_strided_slice %314 {offsets = [0, 0], sizes = [4, 1], strides = [1, 1]} : vector<4x4xf32> to vector<4x1xf32>
    %316 = vector.extract_strided_slice %313 {offsets = [0, 0], sizes = [1, 512], strides = [1, 1]} : vector<4x512xf32> to vector<1x512xf32>
    %317 = vector.broadcast %315 : vector<4x1xf32> to vector<4x512xf32>
    %318 = vector.broadcast %316 : vector<1x512xf32> to vector<4x512xf32>
    %319 = arith.mulf %317, %318 : vector<4x512xf32>
    %320 = vector.extract_strided_slice %314 {offsets = [0, 1], sizes = [4, 1], strides = [1, 1]} : vector<4x4xf32> to vector<4x1xf32>
    %321 = vector.extract_strided_slice %313 {offsets = [1, 0], sizes = [1, 512], strides = [1, 1]} : vector<4x512xf32> to vector<1x512xf32>
    %322 = vector.broadcast %320 : vector<4x1xf32> to vector<4x512xf32>
    %323 = vector.broadcast %321 : vector<1x512xf32> to vector<4x512xf32>
    %324 = arith.mulf %322, %323 : vector<4x512xf32>
    %325 = arith.addf %319, %324 : vector<4x512xf32>
    %326 = vector.extract_strided_slice %314 {offsets = [0, 2], sizes = [4, 1], strides = [1, 1]} : vector<4x4xf32> to vector<4x1xf32>
    %327 = vector.extract_strided_slice %313 {offsets = [2, 0], sizes = [1, 512], strides = [1, 1]} : vector<4x512xf32> to vector<1x512xf32>
    %328 = vector.broadcast %326 : vector<4x1xf32> to vector<4x512xf32>
    %329 = vector.broadcast %327 : vector<1x512xf32> to vector<4x512xf32>
    %330 = arith.mulf %328, %329 : vector<4x512xf32>
    %331 = arith.addf %325, %330 : vector<4x512xf32>
    %332 = vector.extract_strided_slice %314 {offsets = [0, 3], sizes = [4, 1], strides = [1, 1]} : vector<4x4xf32> to vector<4x1xf32>
    %333 = vector.extract_strided_slice %313 {offsets = [3, 0], sizes = [1, 512], strides = [1, 1]} : vector<4x512xf32> to vector<1x512xf32>
    %334 = vector.broadcast %332 : vector<4x1xf32> to vector<4x512xf32>
    %335 = vector.broadcast %333 : vector<1x512xf32> to vector<4x512xf32>
    %336 = arith.mulf %334, %335 : vector<4x512xf32>
    %337 = arith.addf %331, %336 : vector<4x512xf32>
    %c0_69 = arith.constant 0 : index
    %c0_70 = arith.constant 0 : index
    %338 = vector.load %arg7[%c0_69, %c0_70] : memref<4x1xf32, #tpu.memory_space<vmem>>, vector<4x1xf32>
    %339 = vector.broadcast %338 : vector<4x1xf32> to vector<4x512xf32>
    %340 = arith.addf %337, %339 : vector<4x512xf32>
    %c0_71 = arith.constant 0 : index
    %c0_72 = arith.constant 0 : index
    %341 = vector.load %arg12[%c0_71, %c0_72] : memref<4x512xf32, #tpu.memory_space<vmem>>, vector<4x512xf32>
    tpu.vector_store %arg12[%c0_71, %c0_72], %340 {strides = array<i32>} : memref<4x512xf32, #tpu.memory_space<vmem>>, vector<4x512xf32>,
    return
  }
  func.func @transform_0(%arg0: i32) -> (i32, i32) {
    %c0_i32 = arith.constant 0 : i32
    %c0_i32_0 = arith.constant 0 : i32
    %c0_i32_1 = arith.constant 0 : i32
    return %c0_i32, %c0_i32_0 : i32, i32
  }
  func.func @transform_1(%arg0: i32) -> (i32, i32) {
    %c0_i32 = arith.constant 0 : i32
    %c0_i32_0 = arith.constant 0 : i32
    %c0_i32_1 = arith.constant 0 : i32
    return %c0_i32, %c0_i32_0 : i32, i32
  }
  func.func @transform_2(%arg0: i32) -> (i32, i32) {
    %c0_i32 = arith.constant 0 : i32
    %c0_i32_0 = arith.constant 0 : i32
    %c0_i32_1 = arith.constant 0 : i32
    return %c0_i32, %c0_i32_0 : i32, i32
  }
  func.func @transform_3(%arg0: i32) -> (i32, i32) {
    %c0_i32 = arith.constant 0 : i32
    %c0_i32_0 = arith.constant 0 : i32
    %c0_i32_1 = arith.constant 0 : i32
    return %c0_i32, %c0_i32_0 : i32, i32
  }
  func.func @transform_4(%arg0: i32) -> (i32, i32) {
    %c0_i32 = arith.constant 0 : i32
    %c0_i32_0 = arith.constant 0 : i32
    %c0_i32_1 = arith.constant 0 : i32
    return %c0_i32, %c0_i32_0 : i32, i32
  }
  func.func @transform_5(%arg0: i32) -> (i32, i32) {
    %c0_i32 = arith.constant 0 : i32
    %c0_i32_0 = arith.constant 0 : i32
    %c0_i32_1 = arith.constant 0 : i32
    return %c0_i32, %c0_i32_0 : i32, i32
  }
  func.func @transform_6(%arg0: i32) -> (i32, i32) {
    %c0_i32 = arith.constant 0 : i32
    %c0_i32_0 = arith.constant 0 : i32
    %c0_i32_1 = arith.constant 0 : i32
    return %c0_i32, %c0_i32_0 : i32, i32
  }
  func.func @transform_7(%arg0: i32) -> (i32, i32) {
    %c0_i32 = arith.constant 0 : i32
    %c0_i32_0 = arith.constant 0 : i32
    %c0_i32_1 = arith.constant 0 : i32
    return %c0_i32, %c0_i32_0 : i32, i32
  }
  func.func @transform_8(%arg0: i32) -> (i32, i32) {
    %c0_i32 = arith.constant 0 : i32
    %c0_i32_0 = arith.constant 0 : i32
    %c0_i32_1 = arith.constant 0 : i32
    return %c0_i32, %c0_i32_0 : i32, i32
  }
  func.func @transform_9(%arg0: i32) -> (i32, i32) {
    %c0_i32 = arith.constant 0 : i32
    %c0_i32_0 = arith.constant 0 : i32
    %c0_i32_1 = arith.constant 0 : i32
    return %c0_i32, %c0_i32_0 : i32, i32
  }
  func.func @transform_10(%arg0: i32) -> (i32, i32) {
    %c0_i32 = arith.constant 0 : i32
    %c0_i32_0 = arith.constant 0 : i32
    %c0_i32_1 = arith.constant 0 : i32
    return %c0_i32, %c0_i32_0 : i32, i32
  }
  func.func @transform_11(%arg0: i32) -> (i32, i32) {
    %c0_i32 = arith.constant 0 : i32
    %c0_i32_0 = arith.constant 0 : i32
    %c0_i32_1 = arith.constant 0 : i32
    return %c0_i32, %c0_i32_0 : i32, i32
  }
}

</mosaic_0001>

<llo_original>
// kernel: tpu_custom_call.1
$region0: #{tpu_custom_call.1}
  #allocation0 [shape = 'u32[]', space=smem, size = 0x4, offset = 0x4, fixed_abs, tag = 'smem constant byte address 0x4 - core index']
  #allocation1 [shape = 'u32[144,128]{1,0:T(1,128)}', space=vmem, size = 0x12000, scoped, tag = 'internal scratch']
  %s0 = inlined_call_operand.vmem [shape: f32[4,512], index: 0, kind: input, shape index: {}]
  %s1 = inlined_call_operand.vmem [shape: f32[12,4], index: 1, kind: input, shape index: {}]
  %s2 = inlined_call_operand.vmem [shape: f32[12,1], index: 2, kind: input, shape index: {}]
  %s3 = inlined_call_operand.vmem [shape: f32[12,9], index: 3, kind: input, shape index: {}]
  %s4 = inlined_call_operand.vmem [shape: f32[12,1], index: 4, kind: input, shape index: {}]
  %s5 = inlined_call_operand.vmem [shape: f32[4,4], index: 5, kind: input, shape index: {}]
  %s6 = inlined_call_operand.vmem [shape: f32[4,1], index: 6, kind: input, shape index: {}]
  %s7 = inlined_call_operand.vmem [shape: f32[4,1], index: 7, kind: input, shape index: {}]
  %s8 = inlined_call_operand.vmem [shape: f32[4,4], index: 8, kind: input, shape index: {}]
  %s9 = inlined_call_operand.vmem [shape: s32[1,512], index: 9, kind: input, shape index: {}]
  %s10 = inlined_call_operand.vmem [shape: s32[1,512], index: 10, kind: input, shape index: {}]
  %s11 = inlined_call_operand.hbm [shape: f32[4,512], index: 11, kind: output, shape index: {}]
  %s12 = sld [smem:[#allocation0]]
  $region54: #{tpu_custom_call.1} parent=0
    _
  %s14 = ssub.s32 1, %s12
  %s15 = scalar_select 0, %s14, %s12
  $region1: #{tpu_custom_call.1} parent=0
    #allocation2 [shape = 'u8[8192]{0}', space=vmem, size = 0x2000, scoped, tag = 'output window, operand 0, single buffered']
    #allocation3 [shape = 's32[1]{0}', space=sflag, size = 0x4, scoped, tag = 'scoped memory for tpu_custom_call.1']
    %16 = vsyncpa [#allocation3], 0
    // Predicated region
    $region2: #{tpu_custom_call.1} parent=1 // pred_check
      _
    $region3: #{tpu_custom_call.1} parent=1 // pred_check_branch
      %18 = sbr.rel (0) target = $region5
    $region4: #{tpu_custom_call.1} parent=1 // pred_region
      _
    $region5: #{tpu_custom_call.1} parent=1 // pred_fallthru
      _
    // Predicated region
    $region6: #{tpu_custom_call.1} parent=1 // pred_check
      _
    $region7: #{tpu_custom_call.1} parent=1 // pred_check_branch
      %20 = sbr.rel (0) target = $region9
    $region8: #{tpu_custom_call.1} parent=1 // pred_region
      _
    $region9: #{tpu_custom_call.1} parent=1 // pred_fallthru
      _
    // Predicated region
    $region10: #{tpu_custom_call.1} parent=1 // pred_check
      _
    $region11: #{tpu_custom_call.1} parent=1 // pred_check_branch
      %22 = sbr.rel (0) target = $region13
    $region12: #{tpu_custom_call.1} parent=1 // pred_region
      _
    $region13: #{tpu_custom_call.1} parent=1 // pred_fallthru
      _
    // Predicated region
    $region14: #{tpu_custom_call.1} parent=1 // pred_check
      _
    $region15: #{tpu_custom_call.1} parent=1 // pred_check_branch
      %24 = sbr.rel (0) target = $region17
    $region16: #{tpu_custom_call.1} parent=1 // pred_region
      _
    $region17: #{tpu_custom_call.1} parent=1 // pred_fallthru
      _
    // Predicated region
    $region18: #{tpu_custom_call.1} parent=1 // pred_check
      _
    $region19: #{tpu_custom_call.1} parent=1 // pred_check_branch
      %26 = sbr.rel (0) target = $region21
    $region20: #{tpu_custom_call.1} parent=1 // pred_region
      _
    $region21: #{tpu_custom_call.1} parent=1 // pred_fallthru
      _
    // Predicated region
    $region22: #{tpu_custom_call.1} parent=1 // pred_check
      _
    $region23: #{tpu_custom_call.1} parent=1 // pred_check_branch
      %28 = sbr.rel (0) target = $region25
    $region24: #{tpu_custom_call.1} parent=1 // pred_region
      _
    $region25: #{tpu_custom_call.1} parent=1 // pred_fallthru
      _
    // Predicated region
    $region26: #{tpu_custom_call.1} parent=1 // pred_check
      _
    $region27: #{tpu_custom_call.1} parent=1 // pred_check_branch
      %30 = sbr.rel (0) target = $region29
    $region28: #{tpu_custom_call.1} parent=1 // pred_region
      _
    $region29: #{tpu_custom_call.1} parent=1 // pred_fallthru
      _
    // Predicated region
    $region30: #{tpu_custom_call.1} parent=1 // pred_check
      _
    $region31: #{tpu_custom_call.1} parent=1 // pred_check_branch
      %32 = sbr.rel (0) target = $region33
    $region32: #{tpu_custom_call.1} parent=1 // pred_region
      _
    $region33: #{tpu_custom_call.1} parent=1 // pred_fallthru
      _
    // Predicated region
    $region34: #{tpu_custom_call.1} parent=1 // pred_check
      _
    $region35: #{tpu_custom_call.1} parent=1 // pred_check_branch
      %34 = sbr.rel (0) target = $region37
    $region36: #{tpu_custom_call.1} parent=1 // pred_region
      _
    $region37: #{tpu_custom_call.1} parent=1 // pred_fallthru
      _
    // Predicated region
    $region38: #{tpu_custom_call.1} parent=1 // pred_check
      _
    $region39: #{tpu_custom_call.1} parent=1 // pred_check_branch
      %36 = sbr.rel (0) target = $region41
    $region40: #{tpu_custom_call.1} parent=1 // pred_region
      _
    $region41: #{tpu_custom_call.1} parent=1 // pred_fallthru
      _
    // Predicated region
    $region42: #{tpu_custom_call.1} parent=1 // pred_check
      _
    $region43: #{tpu_custom_call.1} parent=1 // pred_check_branch
      %38 = sbr.rel (0) target = $region45
    $region44: #{tpu_custom_call.1} parent=1 // pred_region
      _
    $region45: #{tpu_custom_call.1} parent=1 // pred_fallthru
      _
    %v39 = vld [vmem:[%s0] sm:$0xff]
    %v40 = vld [vmem:[%s0 + $0x8] sm:$0xff]
    %v41 = vld [vmem:[%s1] sm:$0xff]
    %v42 = vld [vmem:[%s1 + $0x8] sm:$0xf]
    %44 = vset.pattern.permute.xlu0 0
    %45 = vperm.xlu0 %44, %v41
    %v46 = vpop.permute.xlu0 %45
    %49 = vset.pattern.permute.xlu0 0
    %50 = vperm.xlu0 %49, %v42
    %v51 = vpop.permute.xlu0 %50
    %v55 = vlaneseq
    %v56 = vshrl.u32 %v55, 7
    %v57 = vsub.s32 0, %v56
    %v58 = vrot.slane %v39, %v57
    %v59 = vlaneseq
    %v60 = vshrl.u32 %v59, 7
    %v61 = vsub.s32 4, %v60
    %v62 = vrot.slane %v39, %v61
    %v63 = vlaneseq
    %v64 = vshrl.u32 %v63, 7
    %v65 = vsub.s32 0, %v64
    %v66 = vrot.slane %v40, %v65
    %v67 = vlaneseq
    %v68 = vshrl.u32 %v67, 7
    %v69 = vsub.s32 4, %v68
    %v70 = vrot.slane %v40, %v69
    %v75 = vlaneseq
    %v76 = vshrl.u32 %v75, 7
    %v77 = vsub.s32 0, %v76
    %v78 = vrot.slane %v58, %v77
    %v79 = vlaneseq
    %v80 = vshrl.u32 %v79, 7
    %v81 = vsub.s32 0, %v80
    %v82 = vrot.slane %v62, %v81
    %v83 = vlaneseq
    %v84 = vshrl.u32 %v83, 7
    %v85 = vsub.s32 0, %v84
    %v86 = vrot.slane %v66, %v85
    %v87 = vlaneseq
    %v88 = vshrl.u32 %v87, 7
    %v89 = vsub.s32 0, %v88
    %v90 = vrot.slane %v70, %v89
    %v91 = vmul.f32 %v46, %v78
    %v92 = vmul.f32 %v46, %v82
    %v93 = vmul.f32 %v46, %v86
    %v94 = vmul.f32 %v46, %v90
    %v95 = vmul.f32 %v51, %v78
    %v96 = vmul.f32 %v51, %v82
    %v97 = vmul.f32 %v51, %v86
    %v98 = vmul.f32 %v51, %v90
    %99 = vset.pattern.permute.xlu0 1
    %100 = vperm.xlu0 %99, %v41
    %v101 = vpop.permute.xlu0 %100
    %103 = vset.pattern.permute.xlu0 1
    %104 = vperm.xlu0 %103, %v42
    %v105 = vpop.permute.xlu0 %104
    %v107 = vlaneseq
    %v108 = vshrl.u32 %v107, 7
    %v109 = vsub.s32 1, %v108
    %v110 = vrot.slane %v39, %v109
    %v111 = vlaneseq
    %v112 = vshrl.u32 %v111, 7
    %v113 = vsub.s32 5, %v112
    %v114 = vrot.slane %v39, %v113
    %v115 = vlaneseq
    %v116 = vshrl.u32 %v115, 7
    %v117 = vsub.s32 1, %v116
    %v118 = vrot.slane %v40, %v117
    %v119 = vlaneseq
    %v120 = vshrl.u32 %v119, 7
    %v121 = vsub.s32 5, %v120
    %v122 = vrot.slane %v40, %v121
    %v127 = vlaneseq
    %v128 = vshrl.u32 %v127, 7
    %v129 = vsub.s32 1, %v128
    %v130 = vrot.slane %v110, %v129
    %v131 = vlaneseq
    %v132 = vshrl.u32 %v131, 7
    %v133 = vsub.s32 1, %v132
    %v134 = vrot.slane %v114, %v133
    %v135 = vlaneseq
    %v136 = vshrl.u32 %v135, 7
    %v137 = vsub.s32 1, %v136
    %v138 = vrot.slane %v118, %v137
    %v139 = vlaneseq
    %v140 = vshrl.u32 %v139, 7
    %v141 = vsub.s32 1, %v140
    %v142 = vrot.slane %v122, %v141
    %v143 = vmul.f32 %v101, %v130
    %v144 = vmul.f32 %v101, %v134
    %v145 = vmul.f32 %v101, %v138
    %v146 = vmul.f32 %v101, %v142
    %v147 = vmul.f32 %v105, %v130
    %v148 = vmul.f32 %v105, %v134
    %v149 = vmul.f32 %v105, %v138
    %v150 = vmul.f32 %v105, %v142
    %v151 = vadd.f32 %v91, %v143
    %v152 = vadd.f32 %v92, %v144
    %v153 = vadd.f32 %v93, %v145
    %v154 = vadd.f32 %v94, %v146
    %v155 = vadd.f32 %v95, %v147
    %v156 = vadd.f32 %v96, %v148
    %v157 = vadd.f32 %v97, %v149
    %v158 = vadd.f32 %v98, %v150
    %159 = vset.pattern.permute.xlu0 2
    %160 = vperm.xlu0 %159, %v41
    %v161 = vpop.permute.xlu0 %160
    %163 = vset.pattern.permute.xlu0 2
    %164 = vperm.xlu0 %163, %v42
    %v165 = vpop.permute.xlu0 %164
    %v167 = vlaneseq
    %v168 = vshrl.u32 %v167, 7
    %v169 = vsub.s32 2, %v168
    %v170 = vrot.slane %v39, %v169
    %v171 = vlaneseq
    %v172 = vshrl.u32 %v171, 7
    %v173 = vsub.s32 6, %v172
    %v174 = vrot.slane %v39, %v173
    %v175 = vlaneseq
    %v176 = vshrl.u32 %v175, 7
    %v177 = vsub.s32 2, %v176
    %v178 = vrot.slane %v40, %v177
    %v179 = vlaneseq
    %v180 = vshrl.u32 %v179, 7
    %v181 = vsub.s32 6, %v180
    %v182 = vrot.slane %v40, %v181
    %v187 = vlaneseq
    %v188 = vshrl.u32 %v187, 7
    %v189 = vsub.s32 2, %v188
    %v190 = vrot.slane %v170, %v189
    %v191 = vlaneseq
    %v192 = vshrl.u32 %v191, 7
    %v193 = vsub.s32 2, %v192
    %v194 = vrot.slane %v174, %v193
    %v195 = vlaneseq
    %v196 = vshrl.u32 %v195, 7
    %v197 = vsub.s32 2, %v196
    %v198 = vrot.slane %v178, %v197
    %v199 = vlaneseq
    %v200 = vshrl.u32 %v199, 7
    %v201 = vsub.s32 2, %v200
    %v202 = vrot.slane %v182, %v201
    %v203 = vmul.f32 %v161, %v190
    %v204 = vmul.f32 %v161, %v194
    %v205 = vmul.f32 %v161, %v198
    %v206 = vmul.f32 %v161, %v202
    %v207 = vmul.f32 %v165, %v190
    %v208 = vmul.f32 %v165, %v194
    %v209 = vmul.f32 %v165, %v198
    %v210 = vmul.f32 %v165, %v202
    %v211 = vadd.f32 %v151, %v203
    %v212 = vadd.f32 %v152, %v204
    %v213 = vadd.f32 %v153, %v205
    %v214 = vadd.f32 %v154, %v206
    %v215 = vadd.f32 %v155, %v207
    %v216 = vadd.f32 %v156, %v208
    %v217 = vadd.f32 %v157, %v209
    %v218 = vadd.f32 %v158, %v210
    %219 = vset.pattern.permute.xlu0 3
    %220 = vperm.xlu0 %219, %v41
    %v221 = vpop.permute.xlu0 %220
    %223 = vset.pattern.permute.xlu0 3
    %224 = vperm.xlu0 %223, %v42
    %v225 = vpop.permute.xlu0 %224
    %v227 = vlaneseq
    %v228 = vshrl.u32 %v227, 7
    %v229 = vsub.s32 3, %v228
    %v230 = vrot.slane %v39, %v229
    %v231 = vlaneseq
    %v232 = vshrl.u32 %v231, 7
    %v233 = vsub.s32 7, %v232
    %v234 = vrot.slane %v39, %v233
    %v235 = vlaneseq
    %v236 = vshrl.u32 %v235, 7
    %v237 = vsub.s32 3, %v236
    %v238 = vrot.slane %v40, %v237
    %v239 = vlaneseq
    %v240 = vshrl.u32 %v239, 7
    %v241 = vsub.s32 7, %v240
    %v242 = vrot.slane %v40, %v241
    %v247 = vlaneseq
    %v248 = vshrl.u32 %v247, 7
    %v249 = vsub.s32 3, %v248
    %v250 = vrot.slane %v230, %v249
    %v251 = vlaneseq
    %v252 = vshrl.u32 %v251, 7
    %v253 = vsub.s32 3, %v252
    %v254 = vrot.slane %v234, %v253
    %v255 = vlaneseq
    %v256 = vshrl.u32 %v255, 7
    %v257 = vsub.s32 3, %v256
    %v258 = vrot.slane %v238, %v257
    %v259 = vlaneseq
    %v260 = vshrl.u32 %v259, 7
    %v261 = vsub.s32 3, %v260
    %v262 = vrot.slane %v242, %v261
    %v263 = vmul.f32 %v221, %v250
    %v264 = vmul.f32 %v221, %v254
    %v265 = vmul.f32 %v221, %v258
    %v266 = vmul.f32 %v221, %v262
    %v267 = vmul.f32 %v225, %v250
    %v268 = vmul.f32 %v225, %v254
    %v269 = vmul.f32 %v225, %v258
    %v270 = vmul.f32 %v225, %v262
    %v271 = vadd.f32 %v211, %v263
    %v272 = vadd.f32 %v212, %v264
    %v273 = vadd.f32 %v213, %v265
    %v274 = vadd.f32 %v214, %v266
    %v275 = vadd.f32 %v215, %v267
    %v276 = vadd.f32 %v216, %v268
    %v277 = vadd.f32 %v217, %v269
    %v278 = vadd.f32 %v218, %v270
    %v279 = vld [vmem:[%s2] sm:$0xff]
    %v280 = vld [vmem:[%s2 + $0x8] sm:$0xf]
    %282 = vset.pattern.permute.xlu0 0
    %283 = vperm.xlu0 %282, %v279
    %v284 = vpop.permute.xlu0 %283
    %287 = vset.pattern.permute.xlu0 0
    %288 = vperm.xlu0 %287, %v280
    %v289 = vpop.permute.xlu0 %288
    %v291 = vadd.f32 %v271, %v284
    %v292 = vadd.f32 %v272, %v284
    %v293 = vadd.f32 %v273, %v284
    %v294 = vadd.f32 %v274, %v284
    %v295 = vadd.f32 %v275, %v289
    %v296 = vadd.f32 %v276, %v289
    %v297 = vadd.f32 %v277, %v289
    %v298 = vadd.f32 %v278, %v289
    %v299 = vld [vmem:[%s9] sm:$0xf]
    %v300 = vld [vmem:[%s10] sm:$0xf]
    %v301 = vld [vmem:[%s3] sm:$0xff]
    %v302 = vld [vmem:[%s3 + $0x8] sm:$0xf]
    %v303 = vld [vmem:[%s4] sm:$0xff]
    %v304 = vld [vmem:[%s4 + $0x8] sm:$0xf]
    %306 = vset.pattern.permute.xlu0 0
    %307 = vperm.xlu0 %306, %v303
    %v308 = vpop.permute.xlu0 %307
    %311 = vset.pattern.permute.xlu0 0
    %312 = vperm.xlu0 %311, %v304
    %v313 = vpop.permute.xlu0 %312
    %v315 = vadd.f32 %v308, 0.0
    %v316 = vadd.f32 %v313, 0.0
    %325 = vrot.lane.b32.xlu0 %v291, 17
    %v326 = vpop.permute.xlu0 %325
    %327 = vrot.lane.b32.xlu0 %v292, 17
    %v328 = vpop.permute.xlu0 %327
    %329 = vrot.lane.b32.xlu0 %v293, 17
    %v330 = vpop.permute.xlu0 %329
    %331 = vrot.lane.b32.xlu0 %v294, 17
    %v332 = vpop.permute.xlu0 %331
    %333 = vrot.lane.b32.xlu0 %v295, 17
    %v334 = vpop.permute.xlu0 %333
    %335 = vrot.lane.b32.xlu0 %v296, 17
    %v336 = vpop.permute.xlu0 %335
    %337 = vrot.lane.b32.xlu0 %v297, 17
    %v338 = vpop.permute.xlu0 %337
    %339 = vrot.lane.b32.xlu0 %v298, 17
    %v340 = vpop.permute.xlu0 %339
    %vm341 = vcmask 138240
    %v342 = vsel %vm341, %v326, %v328
    %v343 = vsel %vm341, %v328, %v330
    %v344 = vsel %vm341, %v330, %v332
    %v345 = vsel %vm341, %v334, %v336
    %v346 = vsel %vm341, %v336, %v338
    %v347 = vsel %vm341, %v338, %v340
    %v356 = vsel %vm341, 0.0, %v326
    %v357 = vsel %vm341, 0.0, %v334
    %359 = vset.pattern.permute.xlu0 0
    %360 = vperm.xlu0 %359, %v301
    %v361 = vpop.permute.xlu0 %360
    %364 = vset.pattern.permute.xlu0 0
    %365 = vperm.xlu0 %364, %v302
    %v366 = vpop.permute.xlu0 %365
    %v368 = vmul.f32 %v356, %v361
    %v369 = vmul.f32 %v342, %v361
    %v370 = vmul.f32 %v343, %v361
    %v371 = vmul.f32 %v344, %v361
    %v372 = vmul.f32 %v357, %v366
    %v373 = vmul.f32 %v345, %v366
    %v374 = vmul.f32 %v346, %v366
    %v375 = vmul.f32 %v347, %v366
    %vm376 = vcmp.ge.s32.totalorder %v299, 1
    %vm377 = vcmp.ge.s32.totalorder %v300, 1
    %vm378 = vmand %vm376, %vm377
    %v379 = vsel %vm378, 1, 0
    %v380 = vlaneseq
    %v381 = vshrl.u32 %v380, 7
    %v382 = vsub.s32 0, %v381
    %v383 = vrot.slane %v379, %v382
    %v384 = vlaneseq
    %v385 = vshrl.u32 %v384, 7
    %v386 = vsub.s32 1, %v385
    %v387 = vrot.slane %v379, %v386
    %v388 = vlaneseq
    %v389 = vshrl.u32 %v388, 7
    %v390 = vsub.s32 2, %v389
    %v391 = vrot.slane %v379, %v390
    %v392 = vlaneseq
    %v393 = vshrl.u32 %v392, 7
    %v394 = vsub.s32 3, %v393
    %v395 = vrot.slane %v379, %v394
    %vm396 = vcmp.eq.s32.totalorder %v383, 1
    %vm397 = vcmp.eq.s32.totalorder %v387, 1
    %vm398 = vcmp.eq.s32.totalorder %v391, 1
    %vm399 = vcmp.eq.s32.totalorder %v395, 1
    %v400 = vsel %vm396, %v368, 0.0
    %v401 = vsel %vm397, %v369, 0.0
    %v402 = vsel %vm398, %v370, 0.0
    %v403 = vsel %vm399, %v371, 0.0
    %v404 = vsel %vm396, %v372, 0.0
    %v405 = vsel %vm397, %v373, 0.0
    %v406 = vsel %vm398, %v374, 0.0
    %v407 = vsel %vm399, %v375, 0.0
    %v408 = vadd.f32 %v315, %v400
    %v409 = vadd.f32 %v315, %v401
    %v410 = vadd.f32 %v315, %v402
    %v411 = vadd.f32 %v315, %v403
    %v412 = vadd.f32 %v316, %v404
    %v413 = vadd.f32 %v316, %v405
    %v414 = vadd.f32 %v316, %v406
    %v415 = vadd.f32 %v316, %v407
    %416 = vrot.lane.b32.xlu0 %v291, 16
    %v417 = vpop.permute.xlu0 %416
    %418 = vrot.lane.b32.xlu0 %v292, 16
    %v419 = vpop.permute.xlu0 %418
    %420 = vrot.lane.b32.xlu0 %v293, 16
    %v421 = vpop.permute.xlu0 %420
    %422 = vrot.lane.b32.xlu0 %v294, 16
    %v423 = vpop.permute.xlu0 %422
    %424 = vrot.lane.b32.xlu0 %v295, 16
    %v425 = vpop.permute.xlu0 %424
    %426 = vrot.lane.b32.xlu0 %v296, 16
    %v427 = vpop.permute.xlu0 %426
    %428 = vrot.lane.b32.xlu0 %v297, 16
    %v429 = vpop.permute.xlu0 %428
    %430 = vrot.lane.b32.xlu0 %v298, 16
    %v431 = vpop.permute.xlu0 %430
    %vm432 = vcmask 130048
    %v433 = vsel %vm432, %v417, %v419
    %v434 = vsel %vm432, %v419, %v421
    %v435 = vsel %vm432, %v421, %v423
    %v436 = vsel %vm432, %v425, %v427
    %v437 = vsel %vm432, %v427, %v429
    %v438 = vsel %vm432, %v429, %v431
    %v447 = vsel %vm432, 0.0, %v417
    %v448 = vsel %vm432, 0.0, %v425
    %449 = vset.pattern.permute.xlu0 1
    %450 = vperm.xlu0 %449, %v301
    %v451 = vpop.permute.xlu0 %450
    %453 = vset.pattern.permute.xlu0 1
    %454 = vperm.xlu0 %453, %v302
    %v455 = vpop.permute.xlu0 %454
    %v457 = vmul.f32 %v447, %v451
    %v458 = vmul.f32 %v433, %v451
    %v459 = vmul.f32 %v434, %v451
    %v460 = vmul.f32 %v435, %v451
    %v461 = vmul.f32 %v448, %v455
    %v462 = vmul.f32 %v436, %v455
    %v463 = vmul.f32 %v437, %v455
    %v464 = vmul.f32 %v438, %v455
    %v465 = vsel %vm376, 1, 0
    %v466 = vlaneseq
    %v467 = vshrl.u32 %v466, 7
    %v468 = vsub.s32 0, %v467
    %v469 = vrot.slane %v465, %v468
    %v470 = vlaneseq
    %v471 = vshrl.u32 %v470, 7
    %v472 = vsub.s32 1, %v471
    %v473 = vrot.slane %v465, %v472
    %v474 = vlaneseq
    %v475 = vshrl.u32 %v474, 7
    %v476 = vsub.s32 2, %v475
    %v477 = vrot.slane %v465, %v476
    %v478 = vlaneseq
    %v479 = vshrl.u32 %v478, 7
    %v480 = vsub.s32 3, %v479
    %v481 = vrot.slane %v465, %v480
    %vm482 = vcmp.eq.s32.totalorder %v469, 1
    %vm483 = vcmp.eq.s32.totalorder %v473, 1
    %vm484 = vcmp.eq.s32.totalorder %v477, 1
    %vm485 = vcmp.eq.s32.totalorder %v481, 1
    %v486 = vsel %vm482, %v457, 0.0
    %v487 = vsel %vm483, %v458, 0.0
    %v488 = vsel %vm484, %v459, 0.0
    %v489 = vsel %vm485, %v460, 0.0
    %v490 = vsel %vm482, %v461, 0.0
    %v491 = vsel %vm483, %v462, 0.0
    %v492 = vsel %vm484, %v463, 0.0
    %v493 = vsel %vm485, %v464, 0.0
    %v494 = vadd.f32 %v408, %v486
    %v495 = vadd.f32 %v409, %v487
    %v496 = vadd.f32 %v410, %v488
    %v497 = vadd.f32 %v411, %v489
    %v498 = vadd.f32 %v412, %v490
    %v499 = vadd.f32 %v413, %v491
    %v500 = vadd.f32 %v414, %v492
    %v501 = vadd.f32 %v415, %v493
    %502 = vrot.lane.b32.xlu0 %v291, 15
    %v503 = vpop.permute.xlu0 %502
    %504 = vrot.lane.b32.xlu0 %v292, 15
    %v505 = vpop.permute.xlu0 %504
    %506 = vrot.lane.b32.xlu0 %v293, 15
    %v507 = vpop.permute.xlu0 %506
    %508 = vrot.lane.b32.xlu0 %v294, 15
    %v509 = vpop.permute.xlu0 %508
    %510 = vrot.lane.b32.xlu0 %v295, 15
    %v511 = vpop.permute.xlu0 %510
    %512 = vrot.lane.b32.xlu0 %v296, 15
    %v513 = vpop.permute.xlu0 %512
    %514 = vrot.lane.b32.xlu0 %v297, 15
    %v515 = vpop.permute.xlu0 %514
    %516 = vrot.lane.b32.xlu0 %v298, 15
    %v517 = vpop.permute.xlu0 %516
    %vm518 = vcmask 121856
    %v519 = vsel %vm518, %v503, %v505
    %v520 = vsel %vm518, %v505, %v507
    %v521 = vsel %vm518, %v507, %v509
    %v522 = vsel %vm518, %v511, %v513
    %v523 = vsel %vm518, %v513, %v515
    %v524 = vsel %vm518, %v515, %v517
    %v533 = vsel %vm518, 0.0, %v503
    %v534 = vsel %vm518, 0.0, %v511
    %535 = vset.pattern.permute.xlu0 2
    %536 = vperm.xlu0 %535, %v301
    %v537 = vpop.permute.xlu0 %536
    %539 = vset.pattern.permute.xlu0 2
    %540 = vperm.xlu0 %539, %v302
    %v541 = vpop.permute.xlu0 %540
    %v543 = vmul.f32 %v533, %v537
    %v544 = vmul.f32 %v519, %v537
    %v545 = vmul.f32 %v520, %v537
    %v546 = vmul.f32 %v521, %v537
    %v547 = vmul.f32 %v534, %v541
    %v548 = vmul.f32 %v522, %v541
    %v549 = vmul.f32 %v523, %v541
    %v550 = vmul.f32 %v524, %v541
    %vm551 = vcmp.le.s32.totalorder %v300, 14
    %vm552 = vmand %vm376, %vm551
    %v553 = vsel %vm552, 1, 0
    %v554 = vlaneseq
    %v555 = vshrl.u32 %v554, 7
    %v556 = vsub.s32 0, %v555
    %v557 = vrot.slane %v553, %v556
    %v558 = vlaneseq
    %v559 = vshrl.u32 %v558, 7
    %v560 = vsub.s32 1, %v559
    %v561 = vrot.slane %v553, %v560
    %v562 = vlaneseq
    %v563 = vshrl.u32 %v562, 7
    %v564 = vsub.s32 2, %v563
    %v565 = vrot.slane %v553, %v564
    %v566 = vlaneseq
    %v567 = vshrl.u32 %v566, 7
    %v568 = vsub.s32 3, %v567
    %v569 = vrot.slane %v553, %v568
    %vm570 = vcmp.eq.s32.totalorder %v557, 1
    %vm571 = vcmp.eq.s32.totalorder %v561, 1
    %vm572 = vcmp.eq.s32.totalorder %v565, 1
    %vm573 = vcmp.eq.s32.totalorder %v569, 1
    %v574 = vsel %vm570, %v543, 0.0
    %v575 = vsel %vm571, %v544, 0.0
    %v576 = vsel %vm572, %v545, 0.0
    %v577 = vsel %vm573, %v546, 0.0
    %v578 = vsel %vm570, %v547, 0.0
    %v579 = vsel %vm571, %v548, 0.0
    %v580 = vsel %vm572, %v549, 0.0
    %v581 = vsel %vm573, %v550, 0.0
    %v582 = vadd.f32 %v494, %v574
    %v583 = vadd.f32 %v495, %v575
    %v584 = vadd.f32 %v496, %v576
    %v585 = vadd.f32 %v497, %v577
    %v586 = vadd.f32 %v498, %v578
    %v587 = vadd.f32 %v499, %v579
    %v588 = vadd.f32 %v500, %v580
    %v589 = vadd.f32 %v501, %v581
    %590 = vrot.lane.b32.xlu0 %v291, 1
    %v591 = vpop.permute.xlu0 %590
    %592 = vrot.lane.b32.xlu0 %v292, 1
    %v593 = vpop.permute.xlu0 %592
    %594 = vrot.lane.b32.xlu0 %v293, 1
    %v595 = vpop.permute.xlu0 %594
    %596 = vrot.lane.b32.xlu0 %v294, 1
    %v597 = vpop.permute.xlu0 %596
    %598 = vrot.lane.b32.xlu0 %v295, 1
    %v599 = vpop.permute.xlu0 %598
    %600 = vrot.lane.b32.xlu0 %v296, 1
    %v601 = vpop.permute.xlu0 %600
    %602 = vrot.lane.b32.xlu0 %v297, 1
    %v603 = vpop.permute.xlu0 %602
    %604 = vrot.lane.b32.xlu0 %v298, 1
    %v605 = vpop.permute.xlu0 %604
    %vm606 = vcmask 7168
    %v607 = vsel %vm606, %v591, %v593
    %v608 = vsel %vm606, %v593, %v595
    %v609 = vsel %vm606, %v595, %v597
    %v610 = vsel %vm606, %v599, %v601
    %v611 = vsel %vm606, %v601, %v603
    %v612 = vsel %vm606, %v603, %v605
    %v621 = vsel %vm606, 0.0, %v591
    %v622 = vsel %vm606, 0.0, %v599
    %623 = vset.pattern.permute.xlu0 3
    %624 = vperm.xlu0 %623, %v301
    %v625 = vpop.permute.xlu0 %624
    %627 = vset.pattern.permute.xlu0 3
    %628 = vperm.xlu0 %627, %v302
    %v629 = vpop.permute.xlu0 %628
    %v631 = vmul.f32 %v621, %v625
    %v632 = vmul.f32 %v607, %v625
    %v633 = vmul.f32 %v608, %v625
    %v634 = vmul.f32 %v609, %v625
    %v635 = vmul.f32 %v622, %v629
    %v636 = vmul.f32 %v610, %v629
    %v637 = vmul.f32 %v611, %v629
    %v638 = vmul.f32 %v612, %v629
    %v639 = vsel %vm377, 1, 0
    %v640 = vlaneseq
    %v641 = vshrl.u32 %v640, 7
    %v642 = vsub.s32 0, %v641
    %v643 = vrot.slane %v639, %v642
    %v644 = vlaneseq
    %v645 = vshrl.u32 %v644, 7
    %v646 = vsub.s32 1, %v645
    %v647 = vrot.slane %v639, %v646
    %v648 = vlaneseq
    %v649 = vshrl.u32 %v648, 7
    %v650 = vsub.s32 2, %v649
    %v651 = vrot.slane %v639, %v650
    %v652 = vlaneseq
    %v653 = vshrl.u32 %v652, 7
    %v654 = vsub.s32 3, %v653
    %v655 = vrot.slane %v639, %v654
    %vm656 = vcmp.eq.s32.totalorder %v643, 1
    %vm657 = vcmp.eq.s32.totalorder %v647, 1
    %vm658 = vcmp.eq.s32.totalorder %v651, 1
    %vm659 = vcmp.eq.s32.totalorder %v655, 1
    %v660 = vsel %vm656, %v631, 0.0
    %v661 = vsel %vm657, %v632, 0.0
    %v662 = vsel %vm658, %v633, 0.0
    %v663 = vsel %vm659, %v634, 0.0
    %v664 = vsel %vm656, %v635, 0.0
    %v665 = vsel %vm657, %v636, 0.0
    %v666 = vsel %vm658, %v637, 0.0
    %v667 = vsel %vm659, %v638, 0.0
    %v668 = vadd.f32 %v582, %v660
    %v669 = vadd.f32 %v583, %v661
    %v670 = vadd.f32 %v584, %v662
    %v671 = vadd.f32 %v585, %v663
    %v672 = vadd.f32 %v586, %v664
    %v673 = vadd.f32 %v587, %v665
    %v674 = vadd.f32 %v588, %v666
    %v675 = vadd.f32 %v589, %v667
    %676 = vset.pattern.permute.xlu0 4
    %677 = vperm.xlu0 %676, %v301
    %v678 = vpop.permute.xlu0 %677
    %680 = vset.pattern.permute.xlu0 4
    %681 = vperm.xlu0 %680, %v302
    %v682 = vpop.permute.xlu0 %681
    %v684 = vmul.f32 %v291, %v678
    %v685 = vmul.f32 %v292, %v678
    %v686 = vmul.f32 %v293, %v678
    %v687 = vmul.f32 %v294, %v678
    %v688 = vmul.f32 %v295, %v682
    %v689 = vmul.f32 %v296, %v682
    %v690 = vmul.f32 %v297, %v682
    %v691 = vmul.f32 %v298, %v682
    %v692 = vadd.f32 %v668, %v684
    %v693 = vadd.f32 %v669, %v685
    %v694 = vadd.f32 %v670, %v686
    %v695 = vadd.f32 %v671, %v687
    %v696 = vadd.f32 %v672, %v688
    %v697 = vadd.f32 %v673, %v689
    %v698 = vadd.f32 %v674, %v690
    %v699 = vadd.f32 %v675, %v691
    %700 = vrot.lane.b32.xlu0 %v291, 127
    %v701 = vpop.permute.xlu0 %700
    %702 = vrot.lane.b32.xlu0 %v292, 127
    %v703 = vpop.permute.xlu0 %702
    %704 = vrot.lane.b32.xlu0 %v293, 127
    %v705 = vpop.permute.xlu0 %704
    %706 = vrot.lane.b32.xlu0 %v294, 127
    %v707 = vpop.permute.xlu0 %706
    %708 = vrot.lane.b32.xlu0 %v295, 127
    %v709 = vpop.permute.xlu0 %708
    %710 = vrot.lane.b32.xlu0 %v296, 127
    %v711 = vpop.permute.xlu0 %710
    %712 = vrot.lane.b32.xlu0 %v297, 127
    %v713 = vpop.permute.xlu0 %712
    %714 = vrot.lane.b32.xlu0 %v298, 127
    %v715 = vpop.permute.xlu0 %714
    %vm716 = vcmask 1039360
    %v717 = vsel %vm716, %v701, %v703
    %v718 = vsel %vm716, %v703, %v705
    %v719 = vsel %vm716, %v705, %v707
    %v720 = vsel %vm716, %v709, %v711
    %v721 = vsel %vm716, %v711, %v713
    %v722 = vsel %vm716, %v713, %v715
    %v731 = vsel %vm716, %v707, 0.0
    %v732 = vsel %vm716, %v715, 0.0
    %733 = vset.pattern.permute.xlu0 5
    %734 = vperm.xlu0 %733, %v301
    %v735 = vpop.permute.xlu0 %734
    %737 = vset.pattern.permute.xlu0 5
    %738 = vperm.xlu0 %737, %v302
    %v739 = vpop.permute.xlu0 %738
    %v741 = vmul.f32 %v717, %v735
    %v742 = vmul.f32 %v718, %v735
    %v743 = vmul.f32 %v719, %v735
    %v744 = vmul.f32 %v731, %v735
    %v745 = vmul.f32 %v720, %v739
    %v746 = vmul.f32 %v721, %v739
    %v747 = vmul.f32 %v722, %v739
    %v748 = vmul.f32 %v732, %v739
    %v749 = vsel %vm551, 1, 0
    %v750 = vlaneseq
    %v751 = vshrl.u32 %v750, 7
    %v752 = vsub.s32 0, %v751
    %v753 = vrot.slane %v749, %v752
    %v754 = vlaneseq
    %v755 = vshrl.u32 %v754, 7
    %v756 = vsub.s32 1, %v755
    %v757 = vrot.slane %v749, %v756
    %v758 = vlaneseq
    %v759 = vshrl.u32 %v758, 7
    %v760 = vsub.s32 2, %v759
    %v761 = vrot.slane %v749, %v760
    %v762 = vlaneseq
    %v763 = vshrl.u32 %v762, 7
    %v764 = vsub.s32 3, %v763
    %v765 = vrot.slane %v749, %v764
    %vm766 = vcmp.eq.s32.totalorder %v753, 1
    %vm767 = vcmp.eq.s32.totalorder %v757, 1
    %vm768 = vcmp.eq.s32.totalorder %v761, 1
    %vm769 = vcmp.eq.s32.totalorder %v765, 1
    %v770 = vsel %vm766, %v741, 0.0
    %v771 = vsel %vm767, %v742, 0.0
    %v772 = vsel %vm768, %v743, 0.0
    %v773 = vsel %vm769, %v744, 0.0
    %v774 = vsel %vm766, %v745, 0.0
    %v775 = vsel %vm767, %v746, 0.0
    %v776 = vsel %vm768, %v747, 0.0
    %v777 = vsel %vm769, %v748, 0.0
    %v778 = vadd.f32 %v692, %v770
    %v779 = vadd.f32 %v693, %v771
    %v780 = vadd.f32 %v694, %v772
    %v781 = vadd.f32 %v695, %v773
    %v782 = vadd.f32 %v696, %v774
    %v783 = vadd.f32 %v697, %v775
    %v784 = vadd.f32 %v698, %v776
    %v785 = vadd.f32 %v699, %v777
    %786 = vrot.lane.b32.xlu0 %v291, 113
    %v787 = vpop.permute.xlu0 %786
    %788 = vrot.lane.b32.xlu0 %v292, 113
    %v789 = vpop.permute.xlu0 %788
    %790 = vrot.lane.b32.xlu0 %v293, 113
    %v791 = vpop.permute.xlu0 %790
    %792 = vrot.lane.b32.xlu0 %v294, 113
    %v793 = vpop.permute.xlu0 %792
    %794 = vrot.lane.b32.xlu0 %v295, 113
    %v795 = vpop.permute.xlu0 %794
    %796 = vrot.lane.b32.xlu0 %v296, 113
    %v797 = vpop.permute.xlu0 %796
    %798 = vrot.lane.b32.xlu0 %v297, 113
    %v799 = vpop.permute.xlu0 %798
    %800 = vrot.lane.b32.xlu0 %v298, 113
    %v801 = vpop.permute.xlu0 %800
    %vm802 = vcmask 924672
    %v803 = vsel %vm802, %v787, %v789
    %v804 = vsel %vm802, %v789, %v791
    %v805 = vsel %vm802, %v791, %v793
    %v806 = vsel %vm802, %v795, %v797
    %v807 = vsel %vm802, %v797, %v799
    %v808 = vsel %vm802, %v799, %v801
    %v817 = vsel %vm802, %v793, 0.0
    %v818 = vsel %vm802, %v801, 0.0
    %819 = vset.pattern.permute.xlu0 6
    %820 = vperm.xlu0 %819, %v301
    %v821 = vpop.permute.xlu0 %820
    %823 = vset.pattern.permute.xlu0 6
    %824 = vperm.xlu0 %823, %v302
    %v825 = vpop.permute.xlu0 %824
    %v827 = vmul.f32 %v803, %v821
    %v828 = vmul.f32 %v804, %v821
    %v829 = vmul.f32 %v805, %v821
    %v830 = vmul.f32 %v817, %v821
    %v831 = vmul.f32 %v806, %v825
    %v832 = vmul.f32 %v807, %v825
    %v833 = vmul.f32 %v808, %v825
    %v834 = vmul.f32 %v818, %v825
    %vm835 = vcmp.le.s32.totalorder %v299, 14
    %vm836 = vmand %vm835, %vm377
    %v837 = vsel %vm836, 1, 0
    %v838 = vlaneseq
    %v839 = vshrl.u32 %v838, 7
    %v840 = vsub.s32 0, %v839
    %v841 = vrot.slane %v837, %v840
    %v842 = vlaneseq
    %v843 = vshrl.u32 %v842, 7
    %v844 = vsub.s32 1, %v843
    %v845 = vrot.slane %v837, %v844
    %v846 = vlaneseq
    %v847 = vshrl.u32 %v846, 7
    %v848 = vsub.s32 2, %v847
    %v849 = vrot.slane %v837, %v848
    %v850 = vlaneseq
    %v851 = vshrl.u32 %v850, 7
    %v852 = vsub.s32 3, %v851
    %v853 = vrot.slane %v837, %v852
    %vm854 = vcmp.eq.s32.totalorder %v841, 1
    %vm855 = vcmp.eq.s32.totalorder %v845, 1
    %vm856 = vcmp.eq.s32.totalorder %v849, 1
    %vm857 = vcmp.eq.s32.totalorder %v853, 1
    %v858 = vsel %vm854, %v827, 0.0
    %v859 = vsel %vm855, %v828, 0.0
    %v860 = vsel %vm856, %v829, 0.0
    %v861 = vsel %vm857, %v830, 0.0
    %v862 = vsel %vm854, %v831, 0.0
    %v863 = vsel %vm855, %v832, 0.0
    %v864 = vsel %vm856, %v833, 0.0
    %v865 = vsel %vm857, %v834, 0.0
    %v866 = vadd.f32 %v778, %v858
    %v867 = vadd.f32 %v779, %v859
    %v868 = vadd.f32 %v780, %v860
    %v869 = vadd.f32 %v781, %v861
    %v870 = vadd.f32 %v782, %v862
    %v871 = vadd.f32 %v783, %v863
    %v872 = vadd.f32 %v784, %v864
    %v873 = vadd.f32 %v785, %v865
    %874 = vrot.lane.b32.xlu0 %v291, 112
    %v875 = vpop.permute.xlu0 %874
    %876 = vrot.lane.b32.xlu0 %v292, 112
    %v877 = vpop.permute.xlu0 %876
    %878 = vrot.lane.b32.xlu0 %v293, 112
    %v879 = vpop.permute.xlu0 %878
    %880 = vrot.lane.b32.xlu0 %v294, 112
    %v881 = vpop.permute.xlu0 %880
    %882 = vrot.lane.b32.xlu0 %v295, 112
    %v883 = vpop.permute.xlu0 %882
    %884 = vrot.lane.b32.xlu0 %v296, 112
    %v885 = vpop.permute.xlu0 %884
    %886 = vrot.lane.b32.xlu0 %v297, 112
    %v887 = vpop.permute.xlu0 %886
    %888 = vrot.lane.b32.xlu0 %v298, 112
    %v889 = vpop.permute.xlu0 %888
    %vm890 = vcmask 916480
    %v891 = vsel %vm890, %v875, %v877
    %v892 = vsel %vm890, %v877, %v879
    %v893 = vsel %vm890, %v879, %v881
    %v894 = vsel %vm890, %v883, %v885
    %v895 = vsel %vm890, %v885, %v887
    %v896 = vsel %vm890, %v887, %v889
    %v905 = vsel %vm890, %v881, 0.0
    %v906 = vsel %vm890, %v889, 0.0
    %907 = vset.pattern.permute.xlu0 7
    %908 = vperm.xlu0 %907, %v301
    %v909 = vpop.permute.xlu0 %908
    %911 = vset.pattern.permute.xlu0 7
    %912 = vperm.xlu0 %911, %v302
    %v913 = vpop.permute.xlu0 %912
    %v915 = vmul.f32 %v891, %v909
    %v916 = vmul.f32 %v892, %v909
    %v917 = vmul.f32 %v893, %v909
    %v918 = vmul.f32 %v905, %v909
    %v919 = vmul.f32 %v894, %v913
    %v920 = vmul.f32 %v895, %v913
    %v921 = vmul.f32 %v896, %v913
    %v922 = vmul.f32 %v906, %v913
    %v923 = vsel %vm835, 1, 0
    %v924 = vlaneseq
    %v925 = vshrl.u32 %v924, 7
    %v926 = vsub.s32 0, %v925
    %v927 = vrot.slane %v923, %v926
    %v928 = vlaneseq
    %v929 = vshrl.u32 %v928, 7
    %v930 = vsub.s32 1, %v929
    %v931 = vrot.slane %v923, %v930
    %v932 = vlaneseq
    %v933 = vshrl.u32 %v932, 7
    %v934 = vsub.s32 2, %v933
    %v935 = vrot.slane %v923, %v934
    %v936 = vlaneseq
    %v937 = vshrl.u32 %v936, 7
    %v938 = vsub.s32 3, %v937
    %v939 = vrot.slane %v923, %v938
    %vm940 = vcmp.eq.s32.totalorder %v927, 1
    %vm941 = vcmp.eq.s32.totalorder %v931, 1
    %vm942 = vcmp.eq.s32.totalorder %v935, 1
    %vm943 = vcmp.eq.s32.totalorder %v939, 1
    %v944 = vsel %vm940, %v915, 0.0
    %v945 = vsel %vm941, %v916, 0.0
    %v946 = vsel %vm942, %v917, 0.0
    %v947 = vsel %vm943, %v918, 0.0
    %v948 = vsel %vm940, %v919, 0.0
    %v949 = vsel %vm941, %v920, 0.0
    %v950 = vsel %vm942, %v921, 0.0
    %v951 = vsel %vm943, %v922, 0.0
    %v952 = vadd.f32 %v866, %v944
    %v953 = vadd.f32 %v867, %v945
    %v954 = vadd.f32 %v868, %v946
    %v955 = vadd.f32 %v869, %v947
    %v956 = vadd.f32 %v870, %v948
    %v957 = vadd.f32 %v871, %v949
    %v958 = vadd.f32 %v872, %v950
    %v959 = vadd.f32 %v873, %v951
    %960 = vrot.lane.b32.xlu0 %v291, 111
    %v961 = vpop.permute.xlu0 %960
    %962 = vrot.lane.b32.xlu0 %v292, 111
    %v963 = vpop.permute.xlu0 %962
    %964 = vrot.lane.b32.xlu0 %v293, 111
    %v965 = vpop.permute.xlu0 %964
    %966 = vrot.lane.b32.xlu0 %v294, 111
    %v967 = vpop.permute.xlu0 %966
    %968 = vrot.lane.b32.xlu0 %v295, 111
    %v969 = vpop.permute.xlu0 %968
    %970 = vrot.lane.b32.xlu0 %v296, 111
    %v971 = vpop.permute.xlu0 %970
    %972 = vrot.lane.b32.xlu0 %v297, 111
    %v973 = vpop.permute.xlu0 %972
    %974 = vrot.lane.b32.xlu0 %v298, 111
    %v975 = vpop.permute.xlu0 %974
    %vm976 = vcmask 908288
    %v977 = vsel %vm976, %v961, %v963
    %v978 = vsel %vm976, %v963, %v965
    %v979 = vsel %vm976, %v965, %v967
    %v980 = vsel %vm976, %v969, %v971
    %v981 = vsel %vm976, %v971, %v973
    %v982 = vsel %vm976, %v973, %v975
    %v991 = vsel %vm976, %v967, 0.0
    %v992 = vsel %vm976, %v975, 0.0
    %993 = vset.pattern.permute.xlu0 8
    %994 = vperm.xlu0 %993, %v301
    %v995 = vpop.permute.xlu0 %994
    %997 = vset.pattern.permute.xlu0 8
    %998 = vperm.xlu0 %997, %v302
    %v999 = vpop.permute.xlu0 %998
    %v1001 = vmul.f32 %v977, %v995
    %v1002 = vmul.f32 %v978, %v995
    %v1003 = vmul.f32 %v979, %v995
    %v1004 = vmul.f32 %v991, %v995
    %v1005 = vmul.f32 %v980, %v999
    %v1006 = vmul.f32 %v981, %v999
    %v1007 = vmul.f32 %v982, %v999
    %v1008 = vmul.f32 %v992, %v999
    %vm1009 = vmand %vm835, %vm551
    %v1010 = vsel %vm1009, 1, 0
    %v1011 = vlaneseq
    %v1012 = vshrl.u32 %v1011, 7
    %v1013 = vsub.s32 0, %v1012
    %v1014 = vrot.slane %v1010, %v1013
    %v1015 = vlaneseq
    %v1016 = vshrl.u32 %v1015, 7
    %v1017 = vsub.s32 1, %v1016
    %v1018 = vrot.slane %v1010, %v1017
    %v1019 = vlaneseq
    %v1020 = vshrl.u32 %v1019, 7
    %v1021 = vsub.s32 2, %v1020
    %v1022 = vrot.slane %v1010, %v1021
    %v1023 = vlaneseq
    %v1024 = vshrl.u32 %v1023, 7
    %v1025 = vsub.s32 3, %v1024
    %v1026 = vrot.slane %v1010, %v1025
    %vm1027 = vcmp.eq.s32.totalorder %v1014, 1
    %vm1028 = vcmp.eq.s32.totalorder %v1018, 1
    %vm1029 = vcmp.eq.s32.totalorder %v1022, 1
    %vm1030 = vcmp.eq.s32.totalorder %v1026, 1
    %v1031 = vsel %vm1027, %v1001, 0.0
    %v1032 = vsel %vm1028, %v1002, 0.0
    %v1033 = vsel %vm1029, %v1003, 0.0
    %v1034 = vsel %vm1030, %v1004, 0.0
    %v1035 = vsel %vm1027, %v1005, 0.0
    %v1036 = vsel %vm1028, %v1006, 0.0
    %v1037 = vsel %vm1029, %v1007, 0.0
    %v1038 = vsel %vm1030, %v1008, 0.0
    %v1039 = vadd.f32 %v952, %v1031
    %v1040 = vadd.f32 %v953, %v1032
    %v1041 = vadd.f32 %v954, %v1033
    %v1042 = vadd.f32 %v955, %v1034
    %v1043 = vadd.f32 %v956, %v1035
    %v1044 = vadd.f32 %v957, %v1036
    %v1045 = vadd.f32 %v958, %v1037
    %v1046 = vadd.f32 %v959, %v1038
    %v1047 = vld [vmem:[%s7] sm:$0xf]
    %v1048 = vld [vmem:[%s8] sm:$0xf]
    %v1049 = vmul.f32 %v1039, %v1039
    %v1050 = vmul.f32 %v1040, %v1040
    %vm1051 = vcmask 1043456
    %v1052 = vsel %vm1051, %v1049, 0.0
    %v1053 = vsel %vm1051, %v1050, 0.0
    %v1054 = vadd.f32 %v1052, %v1053
    %1055 = vadd.xlane.f32.xlu0 %v1054
    %v1056 = vpop.xlane.xlu0 %1055
    %v1057 = vrsqrt.pop %v1056
    %v1058 = vmul.f32 %v1056, %v1057
    %vm1059 = vcmp.eq.f32.partialorder %v1056, inf
    %v1060 = vsel %vm1059, %v1056, %v1058
    %vm1061 = vcmp.eq.f32.partialorder %v1056, 0.0
    %v1062 = vand.u32 %v1056, 2147483648
    %v1063 = vsel %vm1061, %v1062, %v1060
    %v1064 = vmax.f32 %v1063, 1e-12
    %v1065 = vrcp.pop %v1064
    %v1066 = vmul.f32 %v1039, %v1065
    %v1067 = vmul.f32 %v1040, %v1065
    %vm1068 = vcmask 1047556
    %v1069 = vsel %vm1068, %v1049, 0.0
    %v1070 = vsel %vm1068, %v1050, 0.0
    %v1071 = vadd.f32 %v1069, %v1070
    %1072 = vadd.xlane.f32.xlu0 %v1071
    %v1073 = vpop.xlane.xlu0 %1072
    %v1074 = vrsqrt.pop %v1073
    %v1075 = vmul.f32 %v1073, %v1074
    %vm1076 = vcmp.eq.f32.partialorder %v1073, inf
    %v1077 = vsel %vm1076, %v1073, %v1075
    %vm1078 = vcmp.eq.f32.partialorder %v1073, 0.0
    %v1079 = vand.u32 %v1073, 2147483648
    %v1080 = vsel %vm1078, %v1079, %v1077
    %v1081 = vmax.f32 %v1080, 1e-12
    %v1082 = vrcp.pop %v1081
    %v1083 = vmul.f32 %v1039, %v1082
    %v1084 = vmul.f32 %v1040, %v1082
    %v1085 = vlaneseq
    %v1086 = vshrl.u32 %v1085, 7
    %v1087 = vsub.s32 4, %v1086
    %v1088 = vrot.slane %v1083, %v1087
    %v1089 = vlaneseq
    %v1090 = vshrl.u32 %v1089, 7
    %v1091 = vsub.s32 4, %v1090
    %v1092 = vrot.slane %v1084, %v1091
    %v1093 = vmul.f32 %v1066, %v1088
    %v1094 = vmul.f32 %v1067, %v1092
    %v1095 = vsel %vm1051, %v1093, 0.0
    %v1096 = vsel %vm1051, %v1094, 0.0
    %v1097 = vadd.f32 %v1095, %v1096
    %1098 = vadd.xlane.f32.xlu0 %v1097
    %v1099 = vpop.xlane.xlu0 %1098
    %v1100 = vlaneseq
    %v1101 = vshrl.u32 %v1100, 7
    %v1102 = vsub.s32 5, %v1101
    %v1103 = vrot.slane %v1083, %v1102
    %v1104 = vlaneseq
    %v1105 = vshrl.u32 %v1104, 7
    %v1106 = vsub.s32 5, %v1105
    %v1107 = vrot.slane %v1084, %v1106
    %v1108 = vmul.f32 %v1066, %v1103
    %v1109 = vmul.f32 %v1067, %v1107
    %v1110 = vsel %vm1051, %v1108, 0.0
    %v1111 = vsel %vm1051, %v1109, 0.0
    %v1112 = vadd.f32 %v1110, %v1111
    %1113 = vadd.xlane.f32.xlu0 %v1112
    %v1114 = vpop.xlane.xlu0 %1113
    %v1115 = vlaneseq
    %v1116 = vshrl.u32 %v1115, 7
    %v1117 = vsub.s32 6, %v1116
    %v1118 = vrot.slane %v1083, %v1117
    %v1119 = vlaneseq
    %v1120 = vshrl.u32 %v1119, 7
    %v1121 = vsub.s32 6, %v1120
    %v1122 = vrot.slane %v1084, %v1121
    %v1123 = vmul.f32 %v1066, %v1118
    %v1124 = vmul.f32 %v1067, %v1122
    %v1125 = vsel %vm1051, %v1123, 0.0
    %v1126 = vsel %vm1051, %v1124, 0.0
    %v1127 = vadd.f32 %v1125, %v1126
    %1128 = vadd.xlane.f32.xlu0 %v1127
    %v1129 = vpop.xlane.xlu0 %1128
    %v1130 = vlaneseq
    %v1131 = vshrl.u32 %v1130, 7
    %v1132 = vsub.s32 7, %v1131
    %v1133 = vrot.slane %v1083, %v1132
    %v1134 = vlaneseq
    %v1135 = vshrl.u32 %v1134, 7
    %v1136 = vsub.s32 7, %v1135
    %v1137 = vrot.slane %v1084, %v1136
    %v1138 = vmul.f32 %v1066, %v1133
    %v1139 = vmul.f32 %v1067, %v1137
    %v1140 = vsel %vm1051, %v1138, 0.0
    %v1141 = vsel %vm1051, %v1139, 0.0
    %v1142 = vadd.f32 %v1140, %v1141
    %1143 = vadd.xlane.f32.xlu0 %v1142
    %v1144 = vpop.xlane.xlu0 %1143
    %v1145 = vsel %vm606, %v1099, %v1114
    %vm1146 = vcmask 15360
    %v1147 = vsel %vm1146, %v1145, %v1129
    %vm1148 = vcmask 23552
    %v1149 = vsel %vm1148, %v1147, %v1144
    %vm1150 = vcmp.gt.f32.partialorder %v1048, 0.5
    %1152 = vset.pattern.permute.xlu0 0
    %1153 = vperm.xlu0 %1152, %v1047
    %v1154 = vpop.permute.xlu0 %1153
    %v1156 = vmul.f32 %v1149, %v1154
    %v1157 = vsel %vm1150, %v1156, -1e+30
    %vm1158 = vcmask 27648
    %v1159 = vsel %vm1158, %v1157, -inf
    %1160 = vmax.xlane.f32.xlu0 %v1159
    %v1161 = vpop.xlane.xlu0 %1160
    %v1162 = vsub.f32 %v1157, %v1161
    %v1163 = vmul.f32 %v1162, 1.442695
    %v1164 = vpow.pop %v1163
    %v1165 = vsel %vm1158, %v1164, 0.0
    %1166 = vadd.xlane.f32.xlu0 %v1165
    %v1167 = vpop.xlane.xlu0 %1166
    %v1168 = vrcp.pop %v1167
    %v1169 = vmul.f32 %v1164, %v1168
    %1171 = vset.pattern.permute.xlu0 0
    %1172 = vperm.xlu0 %1171, %v1169
    %v1173 = vpop.permute.xlu0 %1172
    %v1175 = vlaneseq
    %v1176 = vshrl.u32 %v1175, 7
    %v1177 = vsub.s32 0, %v1176
    %v1178 = vrot.slane %v1043, %v1177
    %v1179 = vlaneseq
    %v1180 = vshrl.u32 %v1179, 7
    %v1181 = vsub.s32 0, %v1180
    %v1182 = vrot.slane %v1044, %v1181
    %v1183 = vmul.f32 %v1173, %v1178
    %v1184 = vmul.f32 %v1173, %v1182
    %1185 = vset.pattern.permute.xlu0 1
    %1186 = vperm.xlu0 %1185, %v1169
    %v1187 = vpop.permute.xlu0 %1186
    %v1189 = vlaneseq
    %v1190 = vshrl.u32 %v1189, 7
    %v1191 = vsub.s32 1, %v1190
    %v1192 = vrot.slane %v1043, %v1191
    %v1193 = vlaneseq
    %v1194 = vshrl.u32 %v1193, 7
    %v1195 = vsub.s32 1, %v1194
    %v1196 = vrot.slane %v1044, %v1195
    %v1197 = vmul.f32 %v1187, %v1192
    %v1198 = vmul.f32 %v1187, %v1196
    %v1199 = vadd.f32 %v1183, %v1197
    %v1200 = vadd.f32 %v1184, %v1198
    %1201 = vset.pattern.permute.xlu0 2
    %1202 = vperm.xlu0 %1201, %v1169
    %v1203 = vpop.permute.xlu0 %1202
    %v1205 = vlaneseq
    %v1206 = vshrl.u32 %v1205, 7
    %v1207 = vsub.s32 2, %v1206
    %v1208 = vrot.slane %v1043, %v1207
    %v1209 = vlaneseq
    %v1210 = vshrl.u32 %v1209, 7
    %v1211 = vsub.s32 2, %v1210
    %v1212 = vrot.slane %v1044, %v1211
    %v1213 = vmul.f32 %v1203, %v1208
    %v1214 = vmul.f32 %v1203, %v1212
    %v1215 = vadd.f32 %v1199, %v1213
    %v1216 = vadd.f32 %v1200, %v1214
    %1217 = vset.pattern.permute.xlu0 3
    %1218 = vperm.xlu0 %1217, %v1169
    %v1219 = vpop.permute.xlu0 %1218
    %v1221 = vlaneseq
    %v1222 = vshrl.u32 %v1221, 7
    %v1223 = vsub.s32 3, %v1222
    %v1224 = vrot.slane %v1043, %v1223
    %v1225 = vlaneseq
    %v1226 = vshrl.u32 %v1225, 7
    %v1227 = vsub.s32 3, %v1226
    %v1228 = vrot.slane %v1044, %v1227
    %v1229 = vmul.f32 %v1219, %v1224
    %v1230 = vmul.f32 %v1219, %v1228
    %v1231 = vadd.f32 %v1215, %v1229
    %v1232 = vadd.f32 %v1216, %v1230
    %v1233 = vmul.f32 %v1041, %v1041
    %v1234 = vmul.f32 %v1042, %v1042
    %v1235 = vsel %vm1051, %v1233, 0.0
    %v1236 = vsel %vm1051, %v1234, 0.0
    %v1237 = vadd.f32 %v1235, %v1236
    %1238 = vadd.xlane.f32.xlu0 %v1237
    %v1239 = vpop.xlane.xlu0 %1238
    %v1240 = vrsqrt.pop %v1239
    %v1241 = vmul.f32 %v1239, %v1240
    %vm1242 = vcmp.eq.f32.partialorder %v1239, inf
    %v1243 = vsel %vm1242, %v1239, %v1241
    %vm1244 = vcmp.eq.f32.partialorder %v1239, 0.0
    %v1245 = vand.u32 %v1239, 2147483648
    %v1246 = vsel %vm1244, %v1245, %v1243
    %v1247 = vmax.f32 %v1246, 1e-12
    %v1248 = vrcp.pop %v1247
    %v1249 = vmul.f32 %v1041, %v1248
    %v1250 = vmul.f32 %v1042, %v1248
    %v1251 = vsel %vm1068, %v1233, 0.0
    %v1252 = vsel %vm1068, %v1234, 0.0
    %v1253 = vadd.f32 %v1251, %v1252
    %1254 = vadd.xlane.f32.xlu0 %v1253
    %v1255 = vpop.xlane.xlu0 %1254
    %v1256 = vrsqrt.pop %v1255
    %v1257 = vmul.f32 %v1255, %v1256
    %vm1258 = vcmp.eq.f32.partialorder %v1255, inf
    %v1259 = vsel %vm1258, %v1255, %v1257
    %vm1260 = vcmp.eq.f32.partialorder %v1255, 0.0
    %v1261 = vand.u32 %v1255, 2147483648
    %v1262 = vsel %vm1260, %v1261, %v1259
    %v1263 = vmax.f32 %v1262, 1e-12
    %v1264 = vrcp.pop %v1263
    %v1265 = vmul.f32 %v1041, %v1264
    %v1266 = vmul.f32 %v1042, %v1264
    %v1267 = vlaneseq
    %v1268 = vshrl.u32 %v1267, 7
    %v1269 = vsub.s32 4, %v1268
    %v1270 = vrot.slane %v1265, %v1269
    %v1271 = vlaneseq
    %v1272 = vshrl.u32 %v1271, 7
    %v1273 = vsub.s32 4, %v1272
    %v1274 = vrot.slane %v1266, %v1273
    %v1275 = vmul.f32 %v1249, %v1270
    %v1276 = vmul.f32 %v1250, %v1274
    %v1277 = vsel %vm1051, %v1275, 0.0
    %v1278 = vsel %vm1051, %v1276, 0.0
    %v1279 = vadd.f32 %v1277, %v1278
    %1280 = vadd.xlane.f32.xlu0 %v1279
    %v1281 = vpop.xlane.xlu0 %1280
    %v1282 = vlaneseq
    %v1283 = vshrl.u32 %v1282, 7
    %v1284 = vsub.s32 5, %v1283
    %v1285 = vrot.slane %v1265, %v1284
    %v1286 = vlaneseq
    %v1287 = vshrl.u32 %v1286, 7
    %v1288 = vsub.s32 5, %v1287
    %v1289 = vrot.slane %v1266, %v1288
    %v1290 = vmul.f32 %v1249, %v1285
    %v1291 = vmul.f32 %v1250, %v1289
    %v1292 = vsel %vm1051, %v1290, 0.0
    %v1293 = vsel %vm1051, %v1291, 0.0
    %v1294 = vadd.f32 %v1292, %v1293
    %1295 = vadd.xlane.f32.xlu0 %v1294
    %v1296 = vpop.xlane.xlu0 %1295
    %v1297 = vlaneseq
    %v1298 = vshrl.u32 %v1297, 7
    %v1299 = vsub.s32 6, %v1298
    %v1300 = vrot.slane %v1265, %v1299
    %v1301 = vlaneseq
    %v1302 = vshrl.u32 %v1301, 7
    %v1303 = vsub.s32 6, %v1302
    %v1304 = vrot.slane %v1266, %v1303
    %v1305 = vmul.f32 %v1249, %v1300
    %v1306 = vmul.f32 %v1250, %v1304
    %v1307 = vsel %vm1051, %v1305, 0.0
    %v1308 = vsel %vm1051, %v1306, 0.0
    %v1309 = vadd.f32 %v1307, %v1308
    %1310 = vadd.xlane.f32.xlu0 %v1309
    %v1311 = vpop.xlane.xlu0 %1310
    %v1312 = vlaneseq
    %v1313 = vshrl.u32 %v1312, 7
    %v1314 = vsub.s32 7, %v1313
    %v1315 = vrot.slane %v1265, %v1314
    %v1316 = vlaneseq
    %v1317 = vshrl.u32 %v1316, 7
    %v1318 = vsub.s32 7, %v1317
    %v1319 = vrot.slane %v1266, %v1318
    %v1320 = vmul.f32 %v1249, %v1315
    %v1321 = vmul.f32 %v1250, %v1319
    %v1322 = vsel %vm1051, %v1320, 0.0
    %v1323 = vsel %vm1051, %v1321, 0.0
    %v1324 = vadd.f32 %v1322, %v1323
    %1325 = vadd.xlane.f32.xlu0 %v1324
    %v1326 = vpop.xlane.xlu0 %1325
    %v1327 = vsel %vm606, %v1281, %v1296
    %v1328 = vsel %vm1146, %v1327, %v1311
    %v1329 = vsel %vm1148, %v1328, %v1326
    %v1330 = vmul.f32 %v1329, %v1154
    %v1331 = vsel %vm1150, %v1330, -1e+30
    %v1332 = vsel %vm1158, %v1331, -inf
    %1333 = vmax.xlane.f32.xlu0 %v1332
    %v1334 = vpop.xlane.xlu0 %1333
    %v1335 = vsub.f32 %v1331, %v1334
    %v1336 = vmul.f32 %v1335, 1.442695
    %v1337 = vpow.pop %v1336
    %v1338 = vsel %vm1158, %v1337, 0.0
    %1339 = vadd.xlane.f32.xlu0 %v1338
    %v1340 = vpop.xlane.xlu0 %1339
    %v1341 = vrcp.pop %v1340
    %v1342 = vmul.f32 %v1337, %v1341
    %1344 = vset.pattern.permute.xlu0 0
    %1345 = vperm.xlu0 %1344, %v1342
    %v1346 = vpop.permute.xlu0 %1345
    %v1348 = vlaneseq
    %v1349 = vshrl.u32 %v1348, 7
    %v1350 = vsub.s32 0, %v1349
    %v1351 = vrot.slane %v1045, %v1350
    %v1352 = vlaneseq
    %v1353 = vshrl.u32 %v1352, 7
    %v1354 = vsub.s32 0, %v1353
    %v1355 = vrot.slane %v1046, %v1354
    %v1356 = vmul.f32 %v1346, %v1351
    %v1357 = vmul.f32 %v1346, %v1355
    %1358 = vset.pattern.permute.xlu0 1
    %1359 = vperm.xlu0 %1358, %v1342
    %v1360 = vpop.permute.xlu0 %1359
    %v1362 = vlaneseq
    %v1363 = vshrl.u32 %v1362, 7
    %v1364 = vsub.s32 1, %v1363
    %v1365 = vrot.slane %v1045, %v1364
    %v1366 = vlaneseq
    %v1367 = vshrl.u32 %v1366, 7
    %v1368 = vsub.s32 1, %v1367
    %v1369 = vrot.slane %v1046, %v1368
    %v1370 = vmul.f32 %v1360, %v1365
    %v1371 = vmul.f32 %v1360, %v1369
    %v1372 = vadd.f32 %v1356, %v1370
    %v1373 = vadd.f32 %v1357, %v1371
    %1374 = vset.pattern.permute.xlu0 2
    %1375 = vperm.xlu0 %1374, %v1342
    %v1376 = vpop.permute.xlu0 %1375
    %v1378 = vlaneseq
    %v1379 = vshrl.u32 %v1378, 7
    %v1380 = vsub.s32 2, %v1379
    %v1381 = vrot.slane %v1045, %v1380
    %v1382 = vlaneseq
    %v1383 = vshrl.u32 %v1382, 7
    %v1384 = vsub.s32 2, %v1383
    %v1385 = vrot.slane %v1046, %v1384
    %v1386 = vmul.f32 %v1376, %v1381
    %v1387 = vmul.f32 %v1376, %v1385
    %v1388 = vadd.f32 %v1372, %v1386
    %v1389 = vadd.f32 %v1373, %v1387
    %1390 = vset.pattern.permute.xlu0 3
    %1391 = vperm.xlu0 %1390, %v1342
    %v1392 = vpop.permute.xlu0 %1391
    %v1394 = vlaneseq
    %v1395 = vshrl.u32 %v1394, 7
    %v1396 = vsub.s32 3, %v1395
    %v1397 = vrot.slane %v1045, %v1396
    %v1398 = vlaneseq
    %v1399 = vshrl.u32 %v1398, 7
    %v1400 = vsub.s32 3, %v1399
    %v1401 = vrot.slane %v1046, %v1400
    %v1402 = vmul.f32 %v1392, %v1397
    %v1403 = vmul.f32 %v1392, %v1401
    %v1404 = vadd.f32 %v1388, %v1402
    %v1405 = vadd.f32 %v1389, %v1403
    %v1406 = vld [vmem:[%s5] sm:$0xf]
    %1408 = vset.pattern.permute.xlu0 0
    %1409 = vperm.xlu0 %1408, %v1406
    %v1410 = vpop.permute.xlu0 %1409
    %v1412 = vlaneseq
    %v1413 = vshrl.u32 %v1412, 7
    %v1414 = vsub.s32 0, %v1413
    %v1415 = vrot.slane %v1231, %v1414
    %v1416 = vlaneseq
    %v1417 = vshrl.u32 %v1416, 7
    %v1418 = vsub.s32 0, %v1417
    %v1419 = vrot.slane %v1232, %v1418
    %v1420 = vlaneseq
    %v1421 = vshrl.u32 %v1420, 7
    %v1422 = vsub.s32 0, %v1421
    %v1423 = vrot.slane %v1404, %v1422
    %v1424 = vlaneseq
    %v1425 = vshrl.u32 %v1424, 7
    %v1426 = vsub.s32 0, %v1425
    %v1427 = vrot.slane %v1405, %v1426
    %v1428 = vmul.f32 %v1410, %v1415
    %v1429 = vmul.f32 %v1410, %v1419
    %v1430 = vmul.f32 %v1410, %v1423
    %v1431 = vmul.f32 %v1410, %v1427
    %1432 = vset.pattern.permute.xlu0 1
    %1433 = vperm.xlu0 %1432, %v1406
    %v1434 = vpop.permute.xlu0 %1433
    %v1436 = vlaneseq
    %v1437 = vshrl.u32 %v1436, 7
    %v1438 = vsub.s32 1, %v1437
    %v1439 = vrot.slane %v1231, %v1438
    %v1440 = vlaneseq
    %v1441 = vshrl.u32 %v1440, 7
    %v1442 = vsub.s32 1, %v1441
    %v1443 = vrot.slane %v1232, %v1442
    %v1444 = vlaneseq
    %v1445 = vshrl.u32 %v1444, 7
    %v1446 = vsub.s32 1, %v1445
    %v1447 = vrot.slane %v1404, %v1446
    %v1448 = vlaneseq
    %v1449 = vshrl.u32 %v1448, 7
    %v1450 = vsub.s32 1, %v1449
    %v1451 = vrot.slane %v1405, %v1450
    %v1452 = vmul.f32 %v1434, %v1439
    %v1453 = vmul.f32 %v1434, %v1443
    %v1454 = vmul.f32 %v1434, %v1447
    %v1455 = vmul.f32 %v1434, %v1451
    %v1456 = vadd.f32 %v1428, %v1452
    %v1457 = vadd.f32 %v1429, %v1453
    %v1458 = vadd.f32 %v1430, %v1454
    %v1459 = vadd.f32 %v1431, %v1455
    %1460 = vset.pattern.permute.xlu0 2
    %1461 = vperm.xlu0 %1460, %v1406
    %v1462 = vpop.permute.xlu0 %1461
    %v1464 = vlaneseq
    %v1465 = vshrl.u32 %v1464, 7
    %v1466 = vsub.s32 2, %v1465
    %v1467 = vrot.slane %v1231, %v1466
    %v1468 = vlaneseq
    %v1469 = vshrl.u32 %v1468, 7
    %v1470 = vsub.s32 2, %v1469
    %v1471 = vrot.slane %v1232, %v1470
    %v1472 = vlaneseq
    %v1473 = vshrl.u32 %v1472, 7
    %v1474 = vsub.s32 2, %v1473
    %v1475 = vrot.slane %v1404, %v1474
    %v1476 = vlaneseq
    %v1477 = vshrl.u32 %v1476, 7
    %v1478 = vsub.s32 2, %v1477
    %v1479 = vrot.slane %v1405, %v1478
    %v1480 = vmul.f32 %v1462, %v1467
    %v1481 = vmul.f32 %v1462, %v1471
    %v1482 = vmul.f32 %v1462, %v1475
    %v1483 = vmul.f32 %v1462, %v1479
    %v1484 = vadd.f32 %v1456, %v1480
    %v1485 = vadd.f32 %v1457, %v1481
    %v1486 = vadd.f32 %v1458, %v1482
    %v1487 = vadd.f32 %v1459, %v1483
    %1488 = vset.pattern.permute.xlu0 3
    %1489 = vperm.xlu0 %1488, %v1406
    %v1490 = vpop.permute.xlu0 %1489
    %v1492 = vlaneseq
    %v1493 = vshrl.u32 %v1492, 7
    %v1494 = vsub.s32 3, %v1493
    %v1495 = vrot.slane %v1231, %v1494
    %v1496 = vlaneseq
    %v1497 = vshrl.u32 %v1496, 7
    %v1498 = vsub.s32 3, %v1497
    %v1499 = vrot.slane %v1232, %v1498
    %v1500 = vlaneseq
    %v1501 = vshrl.u32 %v1500, 7
    %v1502 = vsub.s32 3, %v1501
    %v1503 = vrot.slane %v1404, %v1502
    %v1504 = vlaneseq
    %v1505 = vshrl.u32 %v1504, 7
    %v1506 = vsub.s32 3, %v1505
    %v1507 = vrot.slane %v1405, %v1506
    %v1508 = vmul.f32 %v1490, %v1495
    %v1509 = vmul.f32 %v1490, %v1499
    %v1510 = vmul.f32 %v1490, %v1503
    %v1511 = vmul.f32 %v1490, %v1507
    %v1512 = vadd.f32 %v1484, %v1508
    %v1513 = vadd.f32 %v1485, %v1509
    %v1514 = vadd.f32 %v1486, %v1510
    %v1515 = vadd.f32 %v1487, %v1511
    %v1516 = vld [vmem:[%s6] sm:$0xf]
    %1518 = vset.pattern.permute.xlu0 0
    %1519 = vperm.xlu0 %1518, %v1516
    %v1520 = vpop.permute.xlu0 %1519
    %v1522 = vadd.f32 %v1512, %v1520
    %v1523 = vadd.f32 %v1513, %v1520
    %v1524 = vadd.f32 %v1514, %v1520
    %v1525 = vadd.f32 %v1515, %v1520
    %v1530 = vcombine.low %v1522, %v1523
    %v1531 = vcombine.low %v1524, %v1525
    %1534 = vst [vmem:[#allocation2] sm:$0xff] %v1530
    %1535 = vst [vmem:[#allocation2 + $0x8] sm:$0xff] %v1531
    // Predicated region
    $region46: #{tpu_custom_call.1} parent=1 // pred_check
      _
    $region47: #{tpu_custom_call.1} parent=1 // pred_check_branch
      %1537 = sbr.rel (0) target = $region49
    $region48: #{tpu_custom_call.1} parent=1 // pred_region
      %s1539 = ssub.s32 256, 256
      %1540 = vsyncadd [#allocation3], %s1539
      %s1542 = sshll.u32 [#allocation2], 4
      %s1543 = int_to_ptr.vmem [resolvable:$true] %s1542
      %1545 = dma.vmem_to_hbm [thread:$0]  %s1543, 256, %s11, [#allocation3]
    $region49: #{tpu_custom_call.1} parent=1 // pred_fallthru
      _
    // Predicated region
    $region50: #{tpu_custom_call.1} parent=1 // pred_check
      _
    $region51: #{tpu_custom_call.1} parent=1 // pred_check_branch
      %1547 = sbr.rel (0) target = $region53
    $region52: #{tpu_custom_call.1} parent=1 // pred_region
      %1548 = dma.done [#allocation3], 256
    $region53: #{tpu_custom_call.1} parent=1 // pred_fallthru
      _
    %1549 = vsyncpa [#allocation3], 1

</llo_original>
